<compile_context>
chip_gen: v5e
topology: v5e:2x2
jax: 0.10.0
libtpu: 0.0.40
codegen_flags: <defaults>
</compile_context>

<pallas_src>
import jax
import jax.numpy as jnp
from jax import lax
from jax.experimental import pallas as pl
from jax.experimental.pallas import tpu as pltpu  # noqa: F401  (TPU backend)


# ----------------------------- Pallas kernel --------------------------------

def encoder_kernel(src_ref,    # [T*B, 1] int32 token ids (time-major)
                   emb_ref,    # [V, E]   embedding table
                   wih_ref,    # [E, 6H]  [W_ih_f | W_ih_b], gate order (r,z,n)
                   bx_ref,     # [1, 6H]  b_ih + (b_hh_r, b_hh_z, 0), both dirs
                   whh_ref,    # [H, 6H]  [W_hh_f | W_hh_b], gate order (r,z,n)
                   bhnf_ref,   # [1, H]   b_hh_n forward
                   bhnb_ref,   # [1, H]   b_hh_n backward
                   wfcf_ref,   # [H, D]   fc rows that multiply the forward hidden
                   wfcb_ref,   # [H, D]   fc rows that multiply the backward hidden
                   bfc_ref,    # [1, D]
                   out_ref,    # [T, B, 2H]
                   hid_ref):   # [B, D]
    T, B, H2 = out_ref.shape
    H = H2 // 2
    TB = src_ref.shape[0]
    V = emb_ref.shape[0]
    f32 = jnp.float32

    # ---- fused embedding lookup: one-hot @ table (exact; V is tiny) ---------
    # TODO(synk): dropout on the embedded input is identity (eval mode only).
    ids = src_ref[...]                                                # [T*B, 1]
    vocab = lax.broadcasted_iota(jnp.int32, (TB, V), 1)
    onehot = jnp.where(ids == vocab, 1.0, 0.0).astype(f32)            # [T*B, V]
    emb = jnp.dot(onehot, emb_ref[...], preferred_element_type=f32)   # [T*B, E]

    # ---- hoisted input projection: one MXU matmul for all t, both dirs ------
    gx = jnp.dot(emb, wih_ref[...], preferred_element_type=f32) + bx_ref[...]

    # Hoisted loop-invariants (JAX does not CSE broadcast_in_dim in the loop).
    whh = whh_ref[...]                                                # [H, 6H]
    bhnf = jnp.broadcast_to(bhnf_ref[...], (B, H))
    bhnb = jnp.broadcast_to(bhnb_ref[...], (B, H))

    def gates(x_r, x_z, x_n, gh_r, gh_z, gh_n, bhn, h):
        # x_* already contain b_ih (+ b_hh_r / b_hh_z); b_hn stays inside r*(.)
        r = jax.nn.sigmoid(x_r + gh_r)
        z = jax.nn.sigmoid(x_z + gh_z)
        n = jnp.tanh(x_n + r * (gh_n + bhn))
        return (1.0 - z) * n + z * h

    # Direction states stacked along sublanes: rows 0:B fwd, rows B:2B bwd.
    h_stack = jnp.zeros((2 * B, H), f32)

    # ---- fused, fully-unrolled bidirectional recurrence (T static, small) ---
    for t in range(T):
        tb = T - 1 - t
        rf = slice(t * B, (t + 1) * B)        # rows of timestep t     (forward)
        rb = slice(tb * B, (tb + 1) * B)      # rows of timestep T-1-t (backward)

        # Single hidden-to-hidden matmul: both directions, all 3 gates.
        gh = jnp.dot(h_stack, whh, preferred_element_type=f32)       # [2B, 6H]
        ghf, ghb = gh[0:B, :], gh[B:2 * B, :]

        h_f = gates(gx[rf, 0:H], gx[rf, H:2 * H], gx[rf, 2 * H:3 * H],
                    ghf[:, 0:H], ghf[:, H:2 * H], ghf[:, 2 * H:3 * H],
                    bhnf, h_stack[0:B, :])
        h_b = gates(gx[rb, 3 * H:4 * H], gx[rb, 4 * H:5 * H], gx[rb, 5 * H:6 * H],
                    ghb[:, 3 * H:4 * H], ghb[:, 4 * H:5 * H], ghb[:, 5 * H:6 * H],
                    bhnb, h_stack[B:2 * B, :])

        # Written exactly once, straight into the fused [T, B, 2H] output.
        out_ref[t, :, 0:H] = h_f
        out_ref[tb, :, H:2 * H] = h_b

        # 8-sublane-aligned axis-0 concat: cheap state rebuild, no lane shuffle.
        h_stack = jnp.concatenate([h_f, h_b], axis=0)

    # hidden = tanh(fc(concat(h_f_final, h_b_final)))
    # fc weight pre-split per direction -> no lane-axis concat in the kernel.
    hid_ref[...] = jnp.tanh(
        jnp.dot(h_stack[0:B, :], wfcf_ref[...], preferred_element_type=f32)
        + jnp.dot(h_stack[B:2 * B, :], wfcb_ref[...], preferred_element_type=f32)
        + bfc_ref[...])


# ------------------------- one-time parameter packing ------------------------

def pack_params(params):
    """Pure layout repacking, executed ONCE at init time (not per forward call)."""
    H = params["whh_f"].shape[0]
    zeros_h = jnp.zeros((1, H), jnp.float32)

    # Fold b_ih (all gates) + the linear b_hh_r / b_hh_z into the x-side bias;
    # b_hn must stay inside the r*(W_hn h + b_hn) term and is passed separately.
    bx_f = params["bih_f"] + jnp.concatenate(
        [params["bhh_f"][:, 0:H], params["bhh_f"][:, H:2 * H], zeros_h], axis=1)
    bx_b = params["bih_b"] + jnp.concatenate(
        [params["bhh_b"][:, 0:H], params["bhh_b"][:, H:2 * H], zeros_h], axis=1)

    return {
        "emb":     params["emb"].astype(jnp.float32),                       # [V, E]
        "wih_cat": jnp.concatenate([params["wih_f"], params["wih_b"]], 1),  # [E, 6H]
        "bx_cat":  jnp.concatenate([bx_f, bx_b], axis=1),                   # [1, 6H]
        "whh_cat": jnp.concatenate([params["whh_f"], params["whh_b"]], 1),  # [H, 6H]
        "bhn_f":   params["bhh_f"][:, 2 * H:3 * H],                         # [1, H]
        "bhn_b":   params["bhh_b"][:, 2 * H:3 * H],                         # [1, H]
        "wfc_f":   params["wfc"][0:H, :],                                   # [H, D]
        "wfc_b":   params["wfc"][H:2 * H, :],                               # [H, D]
        "bfc":     params["bfc"],                                           # [1, D]
    }


# ------------------------------- wrapper -------------------------------------

@jax.jit
def encoder_forward(src, packed):
    """src: [T, B] int32 token ids; packed: output of pack_params().
    Returns (outputs [T, B, 2H], hidden [B, D])."""
    T, B = src.shape
    H = packed["whh_cat"].shape[0]
    D = packed["bfc"].shape[1]
    src2d = src.reshape(T * B, 1).astype(jnp.int32)

    outputs, hidden = pl.pallas_call(
        encoder_kernel,
        out_shape=(
            jax.ShapeDtypeStruct((T, B, 2 * H), jnp.float32),   # GRU outputs
            jax.ShapeDtypeStruct((B, D), jnp.float32),          # decoder init hidden
        ),
    )(src2d, packed["emb"], packed["wih_cat"], packed["bx_cat"],
      packed["whh_cat"], packed["bhn_f"], packed["bhn_b"],
      packed["wfc_f"], packed["wfc_b"], packed["bfc"])
    return outputs, hidden


# --------------------------- pure-JAX reference -------------------------------

def _gru_cell(x, h, w_ih, w_hh, b_ih, b_hh, H):
    """One PyTorch-semantics GRU step. Gate order is (r, z, n)."""
    gx = jnp.dot(x, w_ih, preferred_element_type=jnp.float32) + b_ih   # [B, 3H]
    gh = jnp.dot(h, w_hh, preferred_element_type=jnp.float32) + b_hh   # [B, 3H]
    r = jax.nn.sigmoid(gx[:, 0:H] + gh[:, 0:H])
    z = jax.nn.sigmoid(gx[:, H:2 * H] + gh[:, H:2 * H])
    n = jnp.tanh(gx[:, 2 * H:3 * H] + r * gh[:, 2 * H:3 * H])
    return (1.0 - z) * n + z * h


def encoder_reference(src, params):
    embedded = jnp.take(params["emb"], src, axis=0).astype(jnp.float32)
    T, B, E = embedded.shape
    H = params["whh_f"].shape[1] // 3

    def run_dir(xs, wih, whh, bih, bhh):
        def step(h, x):
            h_new = _gru_cell(x, h, wih, whh, bih, bhh, H)
            return h_new, h_new
        h_final, hs = lax.scan(step, jnp.zeros((B, H), jnp.float32), xs)
        return hs, h_final

    out_f, h_f = run_dir(embedded, params["wih_f"], params["whh_f"],
                         params["bih_f"], params["bhh_f"])
    out_b_rev, h_b = run_dir(embedded[::-1], params["wih_b"], params["whh_b"],
                             params["bih_b"], params["bhh_b"])
    out_b = out_b_rev[::-1]
    outputs = jnp.concatenate([out_f, out_b], axis=-1)
    h_cat = jnp.concatenate([h_f, h_b], axis=-1)
    hidden = jnp.tanh(h_cat @ params["wfc"] + params["bfc"])
    return outputs, hidden


# ------------------------------- params --------------------------------------

def init_params(key, input_dim, emb_dim, enc_hid_dim, dec_hid_dim):
    ks = jax.random.split(key, 12)
    u = lambda k, shape, s=0.1: jax.random.uniform(k, shape, jnp.float32, -s, s)
    H = enc_hid_dim
    return {
        "emb":   u(ks[0], (input_dim, emb_dim)),
        # GRU weights stored pre-transposed: W_ih^T -> [E, 3H], W_hh^T -> [H, 3H]
        "wih_f": u(ks[1], (emb_dim, 3 * H)),
        "whh_f": u(ks[2], (H, 3 * H)),
        "bih_f": u(ks[3], (1, 3 * H)),
        "bhh_f": u(ks[4], (1, 3 * H)),
        "wih_b": u(ks[5], (emb_dim, 3 * H)),
        "whh_b": u(ks[6], (H, 3 * H)),
        "bih_b": u(ks[7], (1, 3 * H)),
        "bhh_b": u(ks[8], (1, 3 * H)),
        # fc: Linear(2H -> D), stored as W^T [2H, D]
        "wfc":   u(ks[9], (2 * H, dec_hid_dim)),
        "bfc":   u(ks[10], (1, dec_hid_dim)),
    }


# --------------------------------- main ---------------------------------------

if __name__ == "__main__":
    INPUT_DIM = 50      # vocab size
    EMB_DIM = 16
    ENC_HID_DIM = 32
    DEC_HID_DIM = 32
    SEQ_LEN = 8
    BATCH = 8           # fills a full sublane group on the recurrent matmuls

    key = jax.random.PRNGKey(0)
    pkey, skey = jax.random.split(key)
    params = init_params(pkey, INPUT_DIM, EMB_DIM, ENC_HID_DIM, DEC_HID_DIM)
    packed = pack_params(params)     # one-time repacking, outside the call path
    src = jax.random.randint(skey, (SEQ_LEN, BATCH), 0, INPUT_DIM, dtype=jnp.int32)

    outputs, hidden = encoder_forward(src, packed)
    outputs = jax.block_until_ready(outputs)
    hidden = jax.block_until_ready(hidden)

    ref_out, ref_hid = encoder_reference(src, params)
    assert outputs.shape == (SEQ_LEN, BATCH, 2 * ENC_HID_DIM)
    assert hidden.shape == (BATCH, DEC_HID_DIM)
    assert jnp.allclose(outputs, ref_out, atol=1e-4, rtol=1e-4)
    assert jnp.allclose(hidden, ref_hid, atol=1e-4, rtol=1e-4)

    print("KERNEL_OK")
</pallas_src>

<mosaic_0001>
module attributes {stable_mosaic.version = 11 : i64} {
  func.func @encoder_kernel(%arg0: memref<64x1xi32, #tpu.memory_space<vmem>>, %arg1: memref<50x16xf32, #tpu.memory_space<vmem>>, %arg2: memref<16x192xf32, #tpu.memory_space<vmem>>, %arg3: memref<1x192xf32, #tpu.memory_space<vmem>>, %arg4: memref<32x192xf32, #tpu.memory_space<vmem>>, %arg5: memref<1x32xf32, #tpu.memory_space<vmem>>, %arg6: memref<1x32xf32, #tpu.memory_space<vmem>>, %arg7: memref<32x32xf32, #tpu.memory_space<vmem>>, %arg8: memref<32x32xf32, #tpu.memory_space<vmem>>, %arg9: memref<1x32xf32, #tpu.memory_space<vmem>>, %arg10: memref<8x8x64xf32, #tpu.memory_space<vmem>>, %arg11: memref<8x32xf32, #tpu.memory_space<vmem>>) attributes {dimension_semantics = [], scalar_prefetch = 0 : i64, scratch_operands = 0 : i64, tpu.core_type = #tpu.core_type<tc>} {
    %c0 = arith.constant 0 : index
    %c0_0 = arith.constant 0 : index
    %0 = vector.load %arg0[%c0, %c0_0] : memref<64x1xi32, #tpu.memory_space<vmem>>, vector<64x1xi32>
    %1 = tpu.iota {dimensions = array<i32: 1>} : vector<64x50xi32>
    %2 = vector.broadcast %0 : vector<64x1xi32> to vector<64x50xi32>
    %3 = arith.cmpi eq, %2, %1 : vector<64x50xi32>
    %cst = arith.constant 1.000000e+00 : f32
    %cst_1 = arith.constant 0.000000e+00 : f32
    %4 = vector.broadcast %cst : f32 to vector<64x50xf32>
    %5 = vector.broadcast %cst_1 : f32 to vector<64x50xf32>
    %6 = arith.select %3, %4, %5 : vector<64x50xi1>, vector<64x50xf32>
    %c0_2 = arith.constant 0 : index
    %c0_3 = arith.constant 0 : index
    %7 = vector.load %arg1[%c0_2, %c0_3] : memref<50x16xf32, #tpu.memory_space<vmem>>, vector<50x16xf32>
    %cst_4 = arith.constant dense<0.000000e+00> : vector<64x16xf32>
    %8 = tpu.matmul %6, %7, %cst_4 {dimension_numbers = #tpu.dot_dimension_numbers<[1], [0], [0], [1], [0, 0, 1, 1], [], []>} : vector<64x50xf32>, vector<50x16xf32>, vector<64x16xf32> -> vector<64x16xf32>
    %c0_5 = arith.constant 0 : index
    %c0_6 = arith.constant 0 : index
    %9 = vector.load %arg2[%c0_5, %c0_6] : memref<16x192xf32, #tpu.memory_space<vmem>>, vector<16x192xf32>
    %cst_7 = arith.constant dense<0.000000e+00> : vector<64x192xf32>
    %10 = tpu.matmul %8, %9, %cst_7 {dimension_numbers = #tpu.dot_dimension_numbers<[1], [0], [0], [1], [0, 0, 1, 1], [], []>} : vector<64x16xf32>, vector<16x192xf32>, vector<64x192xf32> -> vector<64x192xf32>
    %c0_8 = arith.constant 0 : index
    %c0_9 = arith.constant 0 : index
    %11 = vector.load %arg3[%c0_8, %c0_9] : memref<1x192xf32, #tpu.memory_space<vmem>>, vector<1x192xf32>
    %12 = vector.broadcast %11 : vector<1x192xf32> to vector<64x192xf32>
    %13 = arith.addf %10, %12 : vector<64x192xf32>
    %c0_10 = arith.constant 0 : index
    %c0_11 = arith.constant 0 : index
    %14 = vector.load %arg4[%c0_10, %c0_11] : memref<32x192xf32, #tpu.memory_space<vmem>>, vector<32x192xf32>
    %c0_12 = arith.constant 0 : index
    %c0_13 = arith.constant 0 : index
    %15 = vector.load %arg5[%c0_12, %c0_13] : memref<1x32xf32, #tpu.memory_space<vmem>>, vector<1x32xf32>
    %16 = vector.shape_cast %15 : vector<1x32xf32> to vector<1x32xf32>
    %17 = vector.broadcast %16 : vector<1x32xf32> to vector<8x32xf32>
    %c0_14 = arith.constant 0 : index
    %c0_15 = arith.constant 0 : index
    %18 = vector.load %arg6[%c0_14, %c0_15] : memref<1x32xf32, #tpu.memory_space<vmem>>, vector<1x32xf32>
    %19 = vector.shape_cast %18 : vector<1x32xf32> to vector<1x32xf32>
    %20 = vector.broadcast %19 : vector<1x32xf32> to vector<8x32xf32>
    %cst_16 = arith.constant 0.000000e+00 : f32
    %21 = vector.broadcast %cst_16 : f32 to vector<16x32xf32>
    %cst_17 = arith.constant dense<0.000000e+00> : vector<16x192xf32>
    %22 = tpu.matmul %21, %14, %cst_17 {dimension_numbers = #tpu.dot_dimension_numbers<[1], [0], [0], [1], [0, 0, 1, 1], [], []>} : vector<16x32xf32>, vector<32x192xf32>, vector<16x192xf32> -> vector<16x192xf32>
    %23 = vector.extract_strided_slice %22 {offsets = [0, 0], sizes = [8, 192], strides = [1, 1]} : vector<16x192xf32> to vector<8x192xf32>
    %24 = vector.extract_strided_slice %22 {offsets = [8, 0], sizes = [8, 192], strides = [1, 1]} : vector<16x192xf32> to vector<8x192xf32>
    %25 = vector.extract_strided_slice %13 {offsets = [0, 0], sizes = [8, 32], strides = [1, 1]} : vector<64x192xf32> to vector<8x32xf32>
    %26 = vector.extract_strided_slice %13 {offsets = [0, 32], sizes = [8, 32], strides = [1, 1]} : vector<64x192xf32> to vector<8x32xf32>
    %27 = vector.extract_strided_slice %13 {offsets = [0, 64], sizes = [8, 32], strides = [1, 1]} : vector<64x192xf32> to vector<8x32xf32>
    %28 = vector.extract_strided_slice %23 {offsets = [0, 0], sizes = [8, 32], strides = [1, 1]} : vector<8x192xf32> to vector<8x32xf32>
    %29 = vector.extract_strided_slice %23 {offsets = [0, 32], sizes = [8, 32], strides = [1, 1]} : vector<8x192xf32> to vector<8x32xf32>
    %30 = vector.extract_strided_slice %23 {offsets = [0, 64], sizes = [8, 32], strides = [1, 1]} : vector<8x192xf32> to vector<8x32xf32>
    %31 = vector.extract_strided_slice %21 {offsets = [0, 0], sizes = [8, 32], strides = [1, 1]} : vector<16x32xf32> to vector<8x32xf32>
    %32 = arith.addf %25, %28 : vector<8x32xf32>
    %33 = arith.negf %32 : vector<8x32xf32>
    %34 = math.exp %33 : vector<8x32xf32>
    %cst_18 = arith.constant 1.000000e+00 : f32
    %35 = vector.broadcast %cst_18 : f32 to vector<8x32xf32>
    %36 = arith.addf %35, %34 : vector<8x32xf32>
    %37 = arith.divf %35, %36 : vector<8x32xf32>
    %38 = arith.addf %26, %29 : vector<8x32xf32>
    %39 = arith.negf %38 : vector<8x32xf32>
    %40 = math.exp %39 : vector<8x32xf32>
    %cst_19 = arith.constant 1.000000e+00 : f32
    %41 = vector.broadcast %cst_19 : f32 to vector<8x32xf32>
    %42 = arith.addf %41, %40 : vector<8x32xf32>
    %43 = arith.divf %41, %42 : vector<8x32xf32>
    %44 = arith.addf %30, %17 : vector<8x32xf32>
    %45 = arith.mulf %37, %44 : vector<8x32xf32>
    %46 = arith.addf %27, %45 : vector<8x32xf32>
    %47 = math.tanh %46 : vector<8x32xf32>
    %cst_20 = arith.constant 1.000000e+00 : f32
    %48 = vector.broadcast %cst_20 : f32 to vector<8x32xf32>
    %49 = arith.subf %48, %43 : vector<8x32xf32>
    %50 = arith.mulf %49, %47 : vector<8x32xf32>
    %51 = arith.mulf %43, %31 : vector<8x32xf32>
    %52 = arith.addf %50, %51 : vector<8x32xf32>
    %53 = vector.extract_strided_slice %13 {offsets = [56, 96], sizes = [8, 32], strides = [1, 1]} : vector<64x192xf32> to vector<8x32xf32>
    %54 = vector.extract_strided_slice %13 {offsets = [56, 128], sizes = [8, 32], strides = [1, 1]} : vector<64x192xf32> to vector<8x32xf32>
    %55 = vector.extract_strided_slice %13 {offsets = [56, 160], sizes = [8, 32], strides = [1, 1]} : vector<64x192xf32> to vector<8x32xf32>
    %56 = vector.extract_strided_slice %24 {offsets = [0, 96], sizes = [8, 32], strides = [1, 1]} : vector<8x192xf32> to vector<8x32xf32>
    %57 = vector.extract_strided_slice %24 {offsets = [0, 128], sizes = [8, 32], strides = [1, 1]} : vector<8x192xf32> to vector<8x32xf32>
    %58 = vector.extract_strided_slice %24 {offsets = [0, 160], sizes = [8, 32], strides = [1, 1]} : vector<8x192xf32> to vector<8x32xf32>
    %59 = vector.extract_strided_slice %21 {offsets = [8, 0], sizes = [8, 32], strides = [1, 1]} : vector<16x32xf32> to vector<8x32xf32>
    %60 = arith.addf %53, %56 : vector<8x32xf32>
    %61 = arith.negf %60 : vector<8x32xf32>
    %62 = math.exp %61 : vector<8x32xf32>
    %cst_21 = arith.constant 1.000000e+00 : f32
    %63 = vector.broadcast %cst_21 : f32 to vector<8x32xf32>
    %64 = arith.addf %63, %62 : vector<8x32xf32>
    %65 = arith.divf %63, %64 : vector<8x32xf32>
    %66 = arith.addf %54, %57 : vector<8x32xf32>
    %67 = arith.negf %66 : vector<8x32xf32>
    %68 = math.exp %67 : vector<8x32xf32>
    %cst_22 = arith.constant 1.000000e+00 : f32
    %69 = vector.broadcast %cst_22 : f32 to vector<8x32xf32>
    %70 = arith.addf %69, %68 : vector<8x32xf32>
    %71 = arith.divf %69, %70 : vector<8x32xf32>
    %72 = arith.addf %58, %20 : vector<8x32xf32>
    %73 = arith.mulf %65, %72 : vector<8x32xf32>
    %74 = arith.addf %55, %73 : vector<8x32xf32>
    %75 = math.tanh %74 : vector<8x32xf32>
    %cst_23 = arith.constant 1.000000e+00 : f32
    %76 = vector.broadcast %cst_23 : f32 to vector<8x32xf32>
    %77 = arith.subf %76, %71 : vector<8x32xf32>
    %78 = arith.mulf %77, %75 : vector<8x32xf32>
    %79 = arith.mulf %71, %59 : vector<8x32xf32>
    %80 = arith.addf %78, %79 : vector<8x32xf32>
    %c0_24 = arith.constant 0 : index
    %c0_25 = arith.constant 0 : index
    %c0_26 = arith.constant 0 : index
    %81 = vector.load %arg10[%c0_24, %c0_25, %c0_26] : memref<8x8x64xf32, #tpu.memory_space<vmem>>, vector<1x8x32xf32>
    %82 = vector.shape_cast %81 : vector<1x8x32xf32> to vector<8x32xf32>
    %83 = vector.shape_cast %52 : vector<8x32xf32> to vector<1x8x32xf32>
    tpu.vector_store %arg10[%c0_24, %c0_25, %c0_26], %83 {strides = array<i32>} : memref<8x8x64xf32, #tpu.memory_space<vmem>>, vector<1x8x32xf32>,
    %c7 = arith.constant 7 : index
    %c0_27 = arith.constant 0 : index
    %c32 = arith.constant 32 : index
    %84 = vector.load %arg10[%c7, %c0_27, %c32] : memref<8x8x64xf32, #tpu.memory_space<vmem>>, vector<1x8x32xf32>
    %85 = vector.shape_cast %84 : vector<1x8x32xf32> to vector<8x32xf32>
    %86 = vector.shape_cast %80 : vector<8x32xf32> to vector<1x8x32xf32>
    tpu.vector_store %arg10[%c7, %c0_27, %c32], %86 {strides = array<i32>} : memref<8x8x64xf32, #tpu.memory_space<vmem>>, vector<1x8x32xf32>,
    %87 = tpu.concatenate %52, %80 in 0 : vector<8x32xf32>, vector<8x32xf32> -> vector<16x32xf32>
    %cst_28 = arith.constant dense<0.000000e+00> : vector<16x192xf32>
    %88 = tpu.matmul %87, %14, %cst_28 {dimension_numbers = #tpu.dot_dimension_numbers<[1], [0], [0], [1], [0, 0, 1, 1], [], []>} : vector<16x32xf32>, vector<32x192xf32>, vector<16x192xf32> -> vector<16x192xf32>
    %89 = vector.extract_strided_slice %88 {offsets = [0, 0], sizes = [8, 192], strides = [1, 1]} : vector<16x192xf32> to vector<8x192xf32>
    %90 = vector.extract_strided_slice %88 {offsets = [8, 0], sizes = [8, 192], strides = [1, 1]} : vector<16x192xf32> to vector<8x192xf32>
    %91 = vector.extract_strided_slice %13 {offsets = [8, 0], sizes = [8, 32], strides = [1, 1]} : vector<64x192xf32> to vector<8x32xf32>
    %92 = vector.extract_strided_slice %13 {offsets = [8, 32], sizes = [8, 32], strides = [1, 1]} : vector<64x192xf32> to vector<8x32xf32>
    %93 = vector.extract_strided_slice %13 {offsets = [8, 64], sizes = [8, 32], strides = [1, 1]} : vector<64x192xf32> to vector<8x32xf32>
    %94 = vector.extract_strided_slice %89 {offsets = [0, 0], sizes = [8, 32], strides = [1, 1]} : vector<8x192xf32> to vector<8x32xf32>
    %95 = vector.extract_strided_slice %89 {offsets = [0, 32], sizes = [8, 32], strides = [1, 1]} : vector<8x192xf32> to vector<8x32xf32>
    %96 = vector.extract_strided_slice %89 {offsets = [0, 64], sizes = [8, 32], strides = [1, 1]} : vector<8x192xf32> to vector<8x32xf32>
    %97 = vector.extract_strided_slice %87 {offsets = [0, 0], sizes = [8, 32], strides = [1, 1]} : vector<16x32xf32> to vector<8x32xf32>
    %98 = arith.addf %91, %94 : vector<8x32xf32>
    %99 = arith.negf %98 : vector<8x32xf32>
    %100 = math.exp %99 : vector<8x32xf32>
    %cst_29 = arith.constant 1.000000e+00 : f32
    %101 = vector.broadcast %cst_29 : f32 to vector<8x32xf32>
    %102 = arith.addf %101, %100 : vector<8x32xf32>
    %103 = arith.divf %101, %102 : vector<8x32xf32>
    %104 = arith.addf %92, %95 : vector<8x32xf32>
    %105 = arith.negf %104 : vector<8x32xf32>
    %106 = math.exp %105 : vector<8x32xf32>
    %cst_30 = arith.constant 1.000000e+00 : f32
    %107 = vector.broadcast %cst_30 : f32 to vector<8x32xf32>
    %108 = arith.addf %107, %106 : vector<8x32xf32>
    %109 = arith.divf %107, %108 : vector<8x32xf32>
    %110 = arith.addf %96, %17 : vector<8x32xf32>
    %111 = arith.mulf %103, %110 : vector<8x32xf32>
    %112 = arith.addf %93, %111 : vector<8x32xf32>
    %113 = math.tanh %112 : vector<8x32xf32>
    %cst_31 = arith.constant 1.000000e+00 : f32
    %114 = vector.broadcast %cst_31 : f32 to vector<8x32xf32>
    %115 = arith.subf %114, %109 : vector<8x32xf32>
    %116 = arith.mulf %115, %113 : vector<8x32xf32>
    %117 = arith.mulf %109, %97 : vector<8x32xf32>
    %118 = arith.addf %116, %117 : vector<8x32xf32>
    %119 = vector.extract_strided_slice %13 {offsets = [48, 96], sizes = [8, 32], strides = [1, 1]} : vector<64x192xf32> to vector<8x32xf32>
    %120 = vector.extract_strided_slice %13 {offsets = [48, 128], sizes = [8, 32], strides = [1, 1]} : vector<64x192xf32> to vector<8x32xf32>
    %121 = vector.extract_strided_slice %13 {offsets = [48, 160], sizes = [8, 32], strides = [1, 1]} : vector<64x192xf32> to vector<8x32xf32>
    %122 = vector.extract_strided_slice %90 {offsets = [0, 96], sizes = [8, 32], strides = [1, 1]} : vector<8x192xf32> to vector<8x32xf32>
    %123 = vector.extract_strided_slice %90 {offsets = [0, 128], sizes = [8, 32], strides = [1, 1]} : vector<8x192xf32> to vector<8x32xf32>
    %124 = vector.extract_strided_slice %90 {offsets = [0, 160], sizes = [8, 32], strides = [1, 1]} : vector<8x192xf32> to vector<8x32xf32>
    %125 = vector.extract_strided_slice %87 {offsets = [8, 0], sizes = [8, 32], strides = [1, 1]} : vector<16x32xf32> to vector<8x32xf32>
    %126 = arith.addf %119, %122 : vector<8x32xf32>
    %127 = arith.negf %126 : vector<8x32xf32>
    %128 = math.exp %127 : vector<8x32xf32>
    %cst_32 = arith.constant 1.000000e+00 : f32
    %129 = vector.broadcast %cst_32 : f32 to vector<8x32xf32>
    %130 = arith.addf %129, %128 : vector<8x32xf32>
    %131 = arith.divf %129, %130 : vector<8x32xf32>
    %132 = arith.addf %120, %123 : vector<8x32xf32>
    %133 = arith.negf %132 : vector<8x32xf32>
    %134 = math.exp %133 : vector<8x32xf32>
    %cst_33 = arith.constant 1.000000e+00 : f32
    %135 = vector.broadcast %cst_33 : f32 to vector<8x32xf32>
    %136 = arith.addf %135, %134 : vector<8x32xf32>
    %137 = arith.divf %135, %136 : vector<8x32xf32>
    %138 = arith.addf %124, %20 : vector<8x32xf32>
    %139 = arith.mulf %131, %138 : vector<8x32xf32>
    %140 = arith.addf %121, %139 : vector<8x32xf32>
    %141 = math.tanh %140 : vector<8x32xf32>
    %cst_34 = arith.constant 1.000000e+00 : f32
    %142 = vector.broadcast %cst_34 : f32 to vector<8x32xf32>
    %143 = arith.subf %142, %137 : vector<8x32xf32>
    %144 = arith.mulf %143, %141 : vector<8x32xf32>
    %145 = arith.mulf %137, %125 : vector<8x32xf32>
    %146 = arith.addf %144, %145 : vector<8x32xf32>
    %c1 = arith.constant 1 : index
    %c0_35 = arith.constant 0 : index
    %c0_36 = arith.constant 0 : index
    %147 = vector.load %arg10[%c1, %c0_35, %c0_36] : memref<8x8x64xf32, #tpu.memory_space<vmem>>, vector<1x8x32xf32>
    %148 = vector.shape_cast %147 : vector<1x8x32xf32> to vector<8x32xf32>
    %149 = vector.shape_cast %118 : vector<8x32xf32> to vector<1x8x32xf32>
    tpu.vector_store %arg10[%c1, %c0_35, %c0_36], %149 {strides = array<i32>} : memref<8x8x64xf32, #tpu.memory_space<vmem>>, vector<1x8x32xf32>,
    %c6 = arith.constant 6 : index
    %c0_37 = arith.constant 0 : index
    %c32_38 = arith.constant 32 : index
    %150 = vector.load %arg10[%c6, %c0_37, %c32_38] : memref<8x8x64xf32, #tpu.memory_space<vmem>>, vector<1x8x32xf32>
    %151 = vector.shape_cast %150 : vector<1x8x32xf32> to vector<8x32xf32>
    %152 = vector.shape_cast %146 : vector<8x32xf32> to vector<1x8x32xf32>
    tpu.vector_store %arg10[%c6, %c0_37, %c32_38], %152 {strides = array<i32>} : memref<8x8x64xf32, #tpu.memory_space<vmem>>, vector<1x8x32xf32>,
    %153 = tpu.concatenate %118, %146 in 0 : vector<8x32xf32>, vector<8x32xf32> -> vector<16x32xf32>
    %cst_39 = arith.constant dense<0.000000e+00> : vector<16x192xf32>
    %154 = tpu.matmul %153, %14, %cst_39 {dimension_numbers = #tpu.dot_dimension_numbers<[1], [0], [0], [1], [0, 0, 1, 1], [], []>} : vector<16x32xf32>, vector<32x192xf32>, vector<16x192xf32> -> vector<16x192xf32>
    %155 = vector.extract_strided_slice %154 {offsets = [0, 0], sizes = [8, 192], strides = [1, 1]} : vector<16x192xf32> to vector<8x192xf32>
    %156 = vector.extract_strided_slice %154 {offsets = [8, 0], sizes = [8, 192], strides = [1, 1]} : vector<16x192xf32> to vector<8x192xf32>
    %157 = vector.extract_strided_slice %13 {offsets = [16, 0], sizes = [8, 32], strides = [1, 1]} : vector<64x192xf32> to vector<8x32xf32>
    %158 = vector.extract_strided_slice %13 {offsets = [16, 32], sizes = [8, 32], strides = [1, 1]} : vector<64x192xf32> to vector<8x32xf32>
    %159 = vector.extract_strided_slice %13 {offsets = [16, 64], sizes = [8, 32], strides = [1, 1]} : vector<64x192xf32> to vector<8x32xf32>
    %160 = vector.extract_strided_slice %155 {offsets = [0, 0], sizes = [8, 32], strides = [1, 1]} : vector<8x192xf32> to vector<8x32xf32>
    %161 = vector.extract_strided_slice %155 {offsets = [0, 32], sizes = [8, 32], strides = [1, 1]} : vector<8x192xf32> to vector<8x32xf32>
    %162 = vector.extract_strided_slice %155 {offsets = [0, 64], sizes = [8, 32], strides = [1, 1]} : vector<8x192xf32> to vector<8x32xf32>
    %163 = vector.extract_strided_slice %153 {offsets = [0, 0], sizes = [8, 32], strides = [1, 1]} : vector<16x32xf32> to vector<8x32xf32>
    %164 = arith.addf %157, %160 : vector<8x32xf32>
    %165 = arith.negf %164 : vector<8x32xf32>
    %166 = math.exp %165 : vector<8x32xf32>
    %cst_40 = arith.constant 1.000000e+00 : f32
    %167 = vector.broadcast %cst_40 : f32 to vector<8x32xf32>
    %168 = arith.addf %167, %166 : vector<8x32xf32>
    %169 = arith.divf %167, %168 : vector<8x32xf32>
    %170 = arith.addf %158, %161 : vector<8x32xf32>
    %171 = arith.negf %170 : vector<8x32xf32>
    %172 = math.exp %171 : vector<8x32xf32>
    %cst_41 = arith.constant 1.000000e+00 : f32
    %173 = vector.broadcast %cst_41 : f32 to vector<8x32xf32>
    %174 = arith.addf %173, %172 : vector<8x32xf32>
    %175 = arith.divf %173, %174 : vector<8x32xf32>
    %176 = arith.addf %162, %17 : vector<8x32xf32>
    %177 = arith.mulf %169, %176 : vector<8x32xf32>
    %178 = arith.addf %159, %177 : vector<8x32xf32>
    %179 = math.tanh %178 : vector<8x32xf32>
    %cst_42 = arith.constant 1.000000e+00 : f32
    %180 = vector.broadcast %cst_42 : f32 to vector<8x32xf32>
    %181 = arith.subf %180, %175 : vector<8x32xf32>
    %182 = arith.mulf %181, %179 : vector<8x32xf32>
    %183 = arith.mulf %175, %163 : vector<8x32xf32>
    %184 = arith.addf %182, %183 : vector<8x32xf32>
    %185 = vector.extract_strided_slice %13 {offsets = [40, 96], sizes = [8, 32], strides = [1, 1]} : vector<64x192xf32> to vector<8x32xf32>
    %186 = vector.extract_strided_slice %13 {offsets = [40, 128], sizes = [8, 32], strides = [1, 1]} : vector<64x192xf32> to vector<8x32xf32>
    %187 = vector.extract_strided_slice %13 {offsets = [40, 160], sizes = [8, 32], strides = [1, 1]} : vector<64x192xf32> to vector<8x32xf32>
    %188 = vector.extract_strided_slice %156 {offsets = [0, 96], sizes = [8, 32], strides = [1, 1]} : vector<8x192xf32> to vector<8x32xf32>
    %189 = vector.extract_strided_slice %156 {offsets = [0, 128], sizes = [8, 32], strides = [1, 1]} : vector<8x192xf32> to vector<8x32xf32>
    %190 = vector.extract_strided_slice %156 {offsets = [0, 160], sizes = [8, 32], strides = [1, 1]} : vector<8x192xf32> to vector<8x32xf32>
    %191 = vector.extract_strided_slice %153 {offsets = [8, 0], sizes = [8, 32], strides = [1, 1]} : vector<16x32xf32> to vector<8x32xf32>
    %192 = arith.addf %185, %188 : vector<8x32xf32>
    %193 = arith.negf %192 : vector<8x32xf32>
    %194 = math.exp %193 : vector<8x32xf32>
    %cst_43 = arith.constant 1.000000e+00 : f32
    %195 = vector.broadcast %cst_43 : f32 to vector<8x32xf32>
    %196 = arith.addf %195, %194 : vector<8x32xf32>
    %197 = arith.divf %195, %196 : vector<8x32xf32>
    %198 = arith.addf %186, %189 : vector<8x32xf32>
    %199 = arith.negf %198 : vector<8x32xf32>
    %200 = math.exp %199 : vector<8x32xf32>
    %cst_44 = arith.constant 1.000000e+00 : f32
    %201 = vector.broadcast %cst_44 : f32 to vector<8x32xf32>
    %202 = arith.addf %201, %200 : vector<8x32xf32>
    %203 = arith.divf %201, %202 : vector<8x32xf32>
    %204 = arith.addf %190, %20 : vector<8x32xf32>
    %205 = arith.mulf %197, %204 : vector<8x32xf32>
    %206 = arith.addf %187, %205 : vector<8x32xf32>
    %207 = math.tanh %206 : vector<8x32xf32>
    %cst_45 = arith.constant 1.000000e+00 : f32
    %208 = vector.broadcast %cst_45 : f32 to vector<8x32xf32>
    %209 = arith.subf %208, %203 : vector<8x32xf32>
    %210 = arith.mulf %209, %207 : vector<8x32xf32>
    %211 = arith.mulf %203, %191 : vector<8x32xf32>
    %212 = arith.addf %210, %211 : vector<8x32xf32>
    %c2 = arith.constant 2 : index
    %c0_46 = arith.constant 0 : index
    %c0_47 = arith.constant 0 : index
    %213 = vector.load %arg10[%c2, %c0_46, %c0_47] : memref<8x8x64xf32, #tpu.memory_space<vmem>>, vector<1x8x32xf32>
    %214 = vector.shape_cast %213 : vector<1x8x32xf32> to vector<8x32xf32>
    %215 = vector.shape_cast %184 : vector<8x32xf32> to vector<1x8x32xf32>
    tpu.vector_store %arg10[%c2, %c0_46, %c0_47], %215 {strides = array<i32>} : memref<8x8x64xf32, #tpu.memory_space<vmem>>, vector<1x8x32xf32>,
    %c5 = arith.constant 5 : index
    %c0_48 = arith.constant 0 : index
    %c32_49 = arith.constant 32 : index
    %216 = vector.load %arg10[%c5, %c0_48, %c32_49] : memref<8x8x64xf32, #tpu.memory_space<vmem>>, vector<1x8x32xf32>
    %217 = vector.shape_cast %216 : vector<1x8x32xf32> to vector<8x32xf32>
    %218 = vector.shape_cast %212 : vector<8x32xf32> to vector<1x8x32xf32>
    tpu.vector_store %arg10[%c5, %c0_48, %c32_49], %218 {strides = array<i32>} : memref<8x8x64xf32, #tpu.memory_space<vmem>>, vector<1x8x32xf32>,
    %219 = tpu.concatenate %184, %212 in 0 : vector<8x32xf32>, vector<8x32xf32> -> vector<16x32xf32>
    %cst_50 = arith.constant dense<0.000000e+00> : vector<16x192xf32>
    %220 = tpu.matmul %219, %14, %cst_50 {dimension_numbers = #tpu.dot_dimension_numbers<[1], [0], [0], [1], [0, 0, 1, 1], [], []>} : vector<16x32xf32>, vector<32x192xf32>, vector<16x192xf32> -> vector<16x192xf32>
    %221 = vector.extract_strided_slice %220 {offsets = [0, 0], sizes = [8, 192], strides = [1, 1]} : vector<16x192xf32> to vector<8x192xf32>
    %222 = vector.extract_strided_slice %220 {offsets = [8, 0], sizes = [8, 192], strides = [1, 1]} : vector<16x192xf32> to vector<8x192xf32>
    %223 = vector.extract_strided_slice %13 {offsets = [24, 0], sizes = [8, 32], strides = [1, 1]} : vector<64x192xf32> to vector<8x32xf32>
    %224 = vector.extract_strided_slice %13 {offsets = [24, 32], sizes = [8, 32], strides = [1, 1]} : vector<64x192xf32> to vector<8x32xf32>
    %225 = vector.extract_strided_slice %13 {offsets = [24, 64], sizes = [8, 32], strides = [1, 1]} : vector<64x192xf32> to vector<8x32xf32>
    %226 = vector.extract_strided_slice %221 {offsets = [0, 0], sizes = [8, 32], strides = [1, 1]} : vector<8x192xf32> to vector<8x32xf32>
    %227 = vector.extract_strided_slice %221 {offsets = [0, 32], sizes = [8, 32], strides = [1, 1]} : vector<8x192xf32> to vector<8x32xf32>
    %228 = vector.extract_strided_slice %221 {offsets = [0, 64], sizes = [8, 32], strides = [1, 1]} : vector<8x192xf32> to vector<8x32xf32>
    %229 = vector.extract_strided_slice %219 {offsets = [0, 0], sizes = [8, 32], strides = [1, 1]} : vector<16x32xf32> to vector<8x32xf32>
    %230 = arith.addf %223, %226 : vector<8x32xf32>
    %231 = arith.negf %230 : vector<8x32xf32>
    %232 = math.exp %231 : vector<8x32xf32>
    %cst_51 = arith.constant 1.000000e+00 : f32
    %233 = vector.broadcast %cst_51 : f32 to vector<8x32xf32>
    %234 = arith.addf %233, %232 : vector<8x32xf32>
    %235 = arith.divf %233, %234 : vector<8x32xf32>
    %236 = arith.addf %224, %227 : vector<8x32xf32>
    %237 = arith.negf %236 : vector<8x32xf32>
    %238 = math.exp %237 : vector<8x32xf32>
    %cst_52 = arith.constant 1.000000e+00 : f32
    %239 = vector.broadcast %cst_52 : f32 to vector<8x32xf32>
    %240 = arith.addf %239, %238 : vector<8x32xf32>
    %241 = arith.divf %239, %240 : vector<8x32xf32>
    %242 = arith.addf %228, %17 : vector<8x32xf32>
    %243 = arith.mulf %235, %242 : vector<8x32xf32>
    %244 = arith.addf %225, %243 : vector<8x32xf32>
    %245 = math.tanh %244 : vector<8x32xf32>
    %cst_53 = arith.constant 1.000000e+00 : f32
    %246 = vector.broadcast %cst_53 : f32 to vector<8x32xf32>
    %247 = arith.subf %246, %241 : vector<8x32xf32>
    %248 = arith.mulf %247, %245 : vector<8x32xf32>
    %249 = arith.mulf %241, %229 : vector<8x32xf32>
    %250 = arith.addf %248, %249 : vector<8x32xf32>
    %251 = vector.extract_strided_slice %13 {offsets = [32, 96], sizes = [8, 32], strides = [1, 1]} : vector<64x192xf32> to vector<8x32xf32>
    %252 = vector.extract_strided_slice %13 {offsets = [32, 128], sizes = [8, 32], strides = [1, 1]} : vector<64x192xf32> to vector<8x32xf32>
    %253 = vector.extract_strided_slice %13 {offsets = [32, 160], sizes = [8, 32], strides = [1, 1]} : vector<64x192xf32> to vector<8x32xf32>
    %254 = vector.extract_strided_slice %222 {offsets = [0, 96], sizes = [8, 32], strides = [1, 1]} : vector<8x192xf32> to vector<8x32xf32>
    %255 = vector.extract_strided_slice %222 {offsets = [0, 128], sizes = [8, 32], strides = [1, 1]} : vector<8x192xf32> to vector<8x32xf32>
    %256 = vector.extract_strided_slice %222 {offsets = [0, 160], sizes = [8, 32], strides = [1, 1]} : vector<8x192xf32> to vector<8x32xf32>
    %257 = vector.extract_strided_slice %219 {offsets = [8, 0], sizes = [8, 32], strides = [1, 1]} : vector<16x32xf32> to vector<8x32xf32>
    %258 = arith.addf %251, %254 : vector<8x32xf32>
    %259 = arith.negf %258 : vector<8x32xf32>
    %260 = math.exp %259 : vector<8x32xf32>
    %cst_54 = arith.constant 1.000000e+00 : f32
    %261 = vector.broadcast %cst_54 : f32 to vector<8x32xf32>
    %262 = arith.addf %261, %260 : vector<8x32xf32>
    %263 = arith.divf %261, %262 : vector<8x32xf32>
    %264 = arith.addf %252, %255 : vector<8x32xf32>
    %265 = arith.negf %264 : vector<8x32xf32>
    %266 = math.exp %265 : vector<8x32xf32>
    %cst_55 = arith.constant 1.000000e+00 : f32
    %267 = vector.broadcast %cst_55 : f32 to vector<8x32xf32>
    %268 = arith.addf %267, %266 : vector<8x32xf32>
    %269 = arith.divf %267, %268 : vector<8x32xf32>
    %270 = arith.addf %256, %20 : vector<8x32xf32>
    %271 = arith.mulf %263, %270 : vector<8x32xf32>
    %272 = arith.addf %253, %271 : vector<8x32xf32>
    %273 = math.tanh %272 : vector<8x32xf32>
    %cst_56 = arith.constant 1.000000e+00 : f32
    %274 = vector.broadcast %cst_56 : f32 to vector<8x32xf32>
    %275 = arith.subf %274, %269 : vector<8x32xf32>
    %276 = arith.mulf %275, %273 : vector<8x32xf32>
    %277 = arith.mulf %269, %257 : vector<8x32xf32>
    %278 = arith.addf %276, %277 : vector<8x32xf32>
    %c3 = arith.constant 3 : index
    %c0_57 = arith.constant 0 : index
    %c0_58 = arith.constant 0 : index
    %279 = vector.load %arg10[%c3, %c0_57, %c0_58] : memref<8x8x64xf32, #tpu.memory_space<vmem>>, vector<1x8x32xf32>
    %280 = vector.shape_cast %279 : vector<1x8x32xf32> to vector<8x32xf32>
    %281 = vector.shape_cast %250 : vector<8x32xf32> to vector<1x8x32xf32>
    tpu.vector_store %arg10[%c3, %c0_57, %c0_58], %281 {strides = array<i32>} : memref<8x8x64xf32, #tpu.memory_space<vmem>>, vector<1x8x32xf32>,
    %c4 = arith.constant 4 : index
    %c0_59 = arith.constant 0 : index
    %c32_60 = arith.constant 32 : index
    %282 = vector.load %arg10[%c4, %c0_59, %c32_60] : memref<8x8x64xf32, #tpu.memory_space<vmem>>, vector<1x8x32xf32>
    %283 = vector.shape_cast %282 : vector<1x8x32xf32> to vector<8x32xf32>
    %284 = vector.shape_cast %278 : vector<8x32xf32> to vector<1x8x32xf32>
    tpu.vector_store %arg10[%c4, %c0_59, %c32_60], %284 {strides = array<i32>} : memref<8x8x64xf32, #tpu.memory_space<vmem>>, vector<1x8x32xf32>,
    %285 = tpu.concatenate %250, %278 in 0 : vector<8x32xf32>, vector<8x32xf32> -> vector<16x32xf32>
    %cst_61 = arith.constant dense<0.000000e+00> : vector<16x192xf32>
    %286 = tpu.matmul %285, %14, %cst_61 {dimension_numbers = #tpu.dot_dimension_numbers<[1], [0], [0], [1], [0, 0, 1, 1], [], []>} : vector<16x32xf32>, vector<32x192xf32>, vector<16x192xf32> -> vector<16x192xf32>
    %287 = vector.extract_strided_slice %286 {offsets = [0, 0], sizes = [8, 192], strides = [1, 1]} : vector<16x192xf32> to vector<8x192xf32>
    %288 = vector.extract_strided_slice %286 {offsets = [8, 0], sizes = [8, 192], strides = [1, 1]} : vector<16x192xf32> to vector<8x192xf32>
    %289 = vector.extract_strided_slice %13 {offsets = [32, 0], sizes = [8, 32], strides = [1, 1]} : vector<64x192xf32> to vector<8x32xf32>
    %290 = vector.extract_strided_slice %13 {offsets = [32, 32], sizes = [8, 32], strides = [1, 1]} : vector<64x192xf32> to vector<8x32xf32>
    %291 = vector.extract_strided_slice %13 {offsets = [32, 64], sizes = [8, 32], strides = [1, 1]} : vector<64x192xf32> to vector<8x32xf32>
    %292 = vector.extract_strided_slice %287 {offsets = [0, 0], sizes = [8, 32], strides = [1, 1]} : vector<8x192xf32> to vector<8x32xf32>
    %293 = vector.extract_strided_slice %287 {offsets = [0, 32], sizes = [8, 32], strides = [1, 1]} : vector<8x192xf32> to vector<8x32xf32>
    %294 = vector.extract_strided_slice %287 {offsets = [0, 64], sizes = [8, 32], strides = [1, 1]} : vector<8x192xf32> to vector<8x32xf32>
    %295 = vector.extract_strided_slice %285 {offsets = [0, 0], sizes = [8, 32], strides = [1, 1]} : vector<16x32xf32> to vector<8x32xf32>
    %296 = arith.addf %289, %292 : vector<8x32xf32>
    %297 = arith.negf %296 : vector<8x32xf32>
    %298 = math.exp %297 : vector<8x32xf32>
    %cst_62 = arith.constant 1.000000e+00 : f32
    %299 = vector.broadcast %cst_62 : f32 to vector<8x32xf32>
    %300 = arith.addf %299, %298 : vector<8x32xf32>
    %301 = arith.divf %299, %300 : vector<8x32xf32>
    %302 = arith.addf %290, %293 : vector<8x32xf32>
    %303 = arith.negf %302 : vector<8x32xf32>
    %304 = math.exp %303 : vector<8x32xf32>
    %cst_63 = arith.constant 1.000000e+00 : f32
    %305 = vector.broadcast %cst_63 : f32 to vector<8x32xf32>
    %306 = arith.addf %305, %304 : vector<8x32xf32>
    %307 = arith.divf %305, %306 : vector<8x32xf32>
    %308 = arith.addf %294, %17 : vector<8x32xf32>
    %309 = arith.mulf %301, %308 : vector<8x32xf32>
    %310 = arith.addf %291, %309 : vector<8x32xf32>
    %311 = math.tanh %310 : vector<8x32xf32>
    %cst_64 = arith.constant 1.000000e+00 : f32
    %312 = vector.broadcast %cst_64 : f32 to vector<8x32xf32>
    %313 = arith.subf %312, %307 : vector<8x32xf32>
    %314 = arith.mulf %313, %311 : vector<8x32xf32>
    %315 = arith.mulf %307, %295 : vector<8x32xf32>
    %316 = arith.addf %314, %315 : vector<8x32xf32>
    %317 = vector.extract_strided_slice %13 {offsets = [24, 96], sizes = [8, 32], strides = [1, 1]} : vector<64x192xf32> to vector<8x32xf32>
    %318 = vector.extract_strided_slice %13 {offsets = [24, 128], sizes = [8, 32], strides = [1, 1]} : vector<64x192xf32> to vector<8x32xf32>
    %319 = vector.extract_strided_slice %13 {offsets = [24, 160], sizes = [8, 32], strides = [1, 1]} : vector<64x192xf32> to vector<8x32xf32>
    %320 = vector.extract_strided_slice %288 {offsets = [0, 96], sizes = [8, 32], strides = [1, 1]} : vector<8x192xf32> to vector<8x32xf32>
    %321 = vector.extract_strided_slice %288 {offsets = [0, 128], sizes = [8, 32], strides = [1, 1]} : vector<8x192xf32> to vector<8x32xf32>
    %322 = vector.extract_strided_slice %288 {offsets = [0, 160], sizes = [8, 32], strides = [1, 1]} : vector<8x192xf32> to vector<8x32xf32>
    %323 = vector.extract_strided_slice %285 {offsets = [8, 0], sizes = [8, 32], strides = [1, 1]} : vector<16x32xf32> to vector<8x32xf32>
    %324 = arith.addf %317, %320 : vector<8x32xf32>
    %325 = arith.negf %324 : vector<8x32xf32>
    %326 = math.exp %325 : vector<8x32xf32>
    %cst_65 = arith.constant 1.000000e+00 : f32
    %327 = vector.broadcast %cst_65 : f32 to vector<8x32xf32>
    %328 = arith.addf %327, %326 : vector<8x32xf32>
    %329 = arith.divf %327, %328 : vector<8x32xf32>
    %330 = arith.addf %318, %321 : vector<8x32xf32>
    %331 = arith.negf %330 : vector<8x32xf32>
    %332 = math.exp %331 : vector<8x32xf32>
    %cst_66 = arith.constant 1.000000e+00 : f32
    %333 = vector.broadcast %cst_66 : f32 to vector<8x32xf32>
    %334 = arith.addf %333, %332 : vector<8x32xf32>
    %335 = arith.divf %333, %334 : vector<8x32xf32>
    %336 = arith.addf %322, %20 : vector<8x32xf32>
    %337 = arith.mulf %329, %336 : vector<8x32xf32>
    %338 = arith.addf %319, %337 : vector<8x32xf32>
    %339 = math.tanh %338 : vector<8x32xf32>
    %cst_67 = arith.constant 1.000000e+00 : f32
    %340 = vector.broadcast %cst_67 : f32 to vector<8x32xf32>
    %341 = arith.subf %340, %335 : vector<8x32xf32>
    %342 = arith.mulf %341, %339 : vector<8x32xf32>
    %343 = arith.mulf %335, %323 : vector<8x32xf32>
    %344 = arith.addf %342, %343 : vector<8x32xf32>
    %c4_68 = arith.constant 4 : index
    %c0_69 = arith.constant 0 : index
    %c0_70 = arith.constant 0 : index
    %345 = vector.load %arg10[%c4_68, %c0_69, %c0_70] : memref<8x8x64xf32, #tpu.memory_space<vmem>>, vector<1x8x32xf32>
    %346 = vector.shape_cast %345 : vector<1x8x32xf32> to vector<8x32xf32>
    %347 = vector.shape_cast %316 : vector<8x32xf32> to vector<1x8x32xf32>
    tpu.vector_store %arg10[%c4_68, %c0_69, %c0_70], %347 {strides = array<i32>} : memref<8x8x64xf32, #tpu.memory_space<vmem>>, vector<1x8x32xf32>,
    %c3_71 = arith.constant 3 : index
    %c0_72 = arith.constant 0 : index
    %c32_73 = arith.constant 32 : index
    %348 = vector.load %arg10[%c3_71, %c0_72, %c32_73] : memref<8x8x64xf32, #tpu.memory_space<vmem>>, vector<1x8x32xf32>
    %349 = vector.shape_cast %348 : vector<1x8x32xf32> to vector<8x32xf32>
    %350 = vector.shape_cast %344 : vector<8x32xf32> to vector<1x8x32xf32>
    tpu.vector_store %arg10[%c3_71, %c0_72, %c32_73], %350 {strides = array<i32>} : memref<8x8x64xf32, #tpu.memory_space<vmem>>, vector<1x8x32xf32>,
    %351 = tpu.concatenate %316, %344 in 0 : vector<8x32xf32>, vector<8x32xf32> -> vector<16x32xf32>
    %cst_74 = arith.constant dense<0.000000e+00> : vector<16x192xf32>
    %352 = tpu.matmul %351, %14, %cst_74 {dimension_numbers = #tpu.dot_dimension_numbers<[1], [0], [0], [1], [0, 0, 1, 1], [], []>} : vector<16x32xf32>, vector<32x192xf32>, vector<16x192xf32> -> vector<16x192xf32>
    %353 = vector.extract_strided_slice %352 {offsets = [0, 0], sizes = [8, 192], strides = [1, 1]} : vector<16x192xf32> to vector<8x192xf32>
    %354 = vector.extract_strided_slice %352 {offsets = [8, 0], sizes = [8, 192], strides = [1, 1]} : vector<16x192xf32> to vector<8x192xf32>
    %355 = vector.extract_strided_slice %13 {offsets = [40, 0], sizes = [8, 32], strides = [1, 1]} : vector<64x192xf32> to vector<8x32xf32>
    %356 = vector.extract_strided_slice %13 {offsets = [40, 32], sizes = [8, 32], strides = [1, 1]} : vector<64x192xf32> to vector<8x32xf32>
    %357 = vector.extract_strided_slice %13 {offsets = [40, 64], sizes = [8, 32], strides = [1, 1]} : vector<64x192xf32> to vector<8x32xf32>
    %358 = vector.extract_strided_slice %353 {offsets = [0, 0], sizes = [8, 32], strides = [1, 1]} : vector<8x192xf32> to vector<8x32xf32>
    %359 = vector.extract_strided_slice %353 {offsets = [0, 32], sizes = [8, 32], strides = [1, 1]} : vector<8x192xf32> to vector<8x32xf32>
    %360 = vector.extract_strided_slice %353 {offsets = [0, 64], sizes = [8, 32], strides = [1, 1]} : vector<8x192xf32> to vector<8x32xf32>
    %361 = vector.extract_strided_slice %351 {offsets = [0, 0], sizes = [8, 32], strides = [1, 1]} : vector<16x32xf32> to vector<8x32xf32>
    %362 = arith.addf %355, %358 : vector<8x32xf32>
    %363 = arith.negf %362 : vector<8x32xf32>
    %364 = math.exp %363 : vector<8x32xf32>
    %cst_75 = arith.constant 1.000000e+00 : f32
    %365 = vector.broadcast %cst_75 : f32 to vector<8x32xf32>
    %366 = arith.addf %365, %364 : vector<8x32xf32>
    %367 = arith.divf %365, %366 : vector<8x32xf32>
    %368 = arith.addf %356, %359 : vector<8x32xf32>
    %369 = arith.negf %368 : vector<8x32xf32>
    %370 = math.exp %369 : vector<8x32xf32>
    %cst_76 = arith.constant 1.000000e+00 : f32
    %371 = vector.broadcast %cst_76 : f32 to vector<8x32xf32>
    %372 = arith.addf %371, %370 : vector<8x32xf32>
    %373 = arith.divf %371, %372 : vector<8x32xf32>
    %374 = arith.addf %360, %17 : vector<8x32xf32>
    %375 = arith.mulf %367, %374 : vector<8x32xf32>
    %376 = arith.addf %357, %375 : vector<8x32xf32>
    %377 = math.tanh %376 : vector<8x32xf32>
    %cst_77 = arith.constant 1.000000e+00 : f32
    %378 = vector.broadcast %cst_77 : f32 to vector<8x32xf32>
    %379 = arith.subf %378, %373 : vector<8x32xf32>
    %380 = arith.mulf %379, %377 : vector<8x32xf32>
    %381 = arith.mulf %373, %361 : vector<8x32xf32>
    %382 = arith.addf %380, %381 : vector<8x32xf32>
    %383 = vector.extract_strided_slice %13 {offsets = [16, 96], sizes = [8, 32], strides = [1, 1]} : vector<64x192xf32> to vector<8x32xf32>
    %384 = vector.extract_strided_slice %13 {offsets = [16, 128], sizes = [8, 32], strides = [1, 1]} : vector<64x192xf32> to vector<8x32xf32>
    %385 = vector.extract_strided_slice %13 {offsets = [16, 160], sizes = [8, 32], strides = [1, 1]} : vector<64x192xf32> to vector<8x32xf32>
    %386 = vector.extract_strided_slice %354 {offsets = [0, 96], sizes = [8, 32], strides = [1, 1]} : vector<8x192xf32> to vector<8x32xf32>
    %387 = vector.extract_strided_slice %354 {offsets = [0, 128], sizes = [8, 32], strides = [1, 1]} : vector<8x192xf32> to vector<8x32xf32>
    %388 = vector.extract_strided_slice %354 {offsets = [0, 160], sizes = [8, 32], strides = [1, 1]} : vector<8x192xf32> to vector<8x32xf32>
    %389 = vector.extract_strided_slice %351 {offsets = [8, 0], sizes = [8, 32], strides = [1, 1]} : vector<16x32xf32> to vector<8x32xf32>
    %390 = arith.addf %383, %386 : vector<8x32xf32>
    %391 = arith.negf %390 : vector<8x32xf32>
    %392 = math.exp %391 : vector<8x32xf32>
    %cst_78 = arith.constant 1.000000e+00 : f32
    %393 = vector.broadcast %cst_78 : f32 to vector<8x32xf32>
    %394 = arith.addf %393, %392 : vector<8x32xf32>
    %395 = arith.divf %393, %394 : vector<8x32xf32>
    %396 = arith.addf %384, %387 : vector<8x32xf32>
    %397 = arith.negf %396 : vector<8x32xf32>
    %398 = math.exp %397 : vector<8x32xf32>
    %cst_79 = arith.constant 1.000000e+00 : f32
    %399 = vector.broadcast %cst_79 : f32 to vector<8x32xf32>
    %400 = arith.addf %399, %398 : vector<8x32xf32>
    %401 = arith.divf %399, %400 : vector<8x32xf32>
    %402 = arith.addf %388, %20 : vector<8x32xf32>
    %403 = arith.mulf %395, %402 : vector<8x32xf32>
    %404 = arith.addf %385, %403 : vector<8x32xf32>
    %405 = math.tanh %404 : vector<8x32xf32>
    %cst_80 = arith.constant 1.000000e+00 : f32
    %406 = vector.broadcast %cst_80 : f32 to vector<8x32xf32>
    %407 = arith.subf %406, %401 : vector<8x32xf32>
    %408 = arith.mulf %407, %405 : vector<8x32xf32>
    %409 = arith.mulf %401, %389 : vector<8x32xf32>
    %410 = arith.addf %408, %409 : vector<8x32xf32>
    %c5_81 = arith.constant 5 : index
    %c0_82 = arith.constant 0 : index
    %c0_83 = arith.constant 0 : index
    %411 = vector.load %arg10[%c5_81, %c0_82, %c0_83] : memref<8x8x64xf32, #tpu.memory_space<vmem>>, vector<1x8x32xf32>
    %412 = vector.shape_cast %411 : vector<1x8x32xf32> to vector<8x32xf32>
    %413 = vector.shape_cast %382 : vector<8x32xf32> to vector<1x8x32xf32>
    tpu.vector_store %arg10[%c5_81, %c0_82, %c0_83], %413 {strides = array<i32>} : memref<8x8x64xf32, #tpu.memory_space<vmem>>, vector<1x8x32xf32>,
    %c2_84 = arith.constant 2 : index
    %c0_85 = arith.constant 0 : index
    %c32_86 = arith.constant 32 : index
    %414 = vector.load %arg10[%c2_84, %c0_85, %c32_86] : memref<8x8x64xf32, #tpu.memory_space<vmem>>, vector<1x8x32xf32>
    %415 = vector.shape_cast %414 : vector<1x8x32xf32> to vector<8x32xf32>
    %416 = vector.shape_cast %410 : vector<8x32xf32> to vector<1x8x32xf32>
    tpu.vector_store %arg10[%c2_84, %c0_85, %c32_86], %416 {strides = array<i32>} : memref<8x8x64xf32, #tpu.memory_space<vmem>>, vector<1x8x32xf32>,
    %417 = tpu.concatenate %382, %410 in 0 : vector<8x32xf32>, vector<8x32xf32> -> vector<16x32xf32>
    %cst_87 = arith.constant dense<0.000000e+00> : vector<16x192xf32>
    %418 = tpu.matmul %417, %14, %cst_87 {dimension_numbers = #tpu.dot_dimension_numbers<[1], [0], [0], [1], [0, 0, 1, 1], [], []>} : vector<16x32xf32>, vector<32x192xf32>, vector<16x192xf32> -> vector<16x192xf32>
    %419 = vector.extract_strided_slice %418 {offsets = [0, 0], sizes = [8, 192], strides = [1, 1]} : vector<16x192xf32> to vector<8x192xf32>
    %420 = vector.extract_strided_slice %418 {offsets = [8, 0], sizes = [8, 192], strides = [1, 1]} : vector<16x192xf32> to vector<8x192xf32>
    %421 = vector.extract_strided_slice %13 {offsets = [48, 0], sizes = [8, 32], strides = [1, 1]} : vector<64x192xf32> to vector<8x32xf32>
    %422 = vector.extract_strided_slice %13 {offsets = [48, 32], sizes = [8, 32], strides = [1, 1]} : vector<64x192xf32> to vector<8x32xf32>
    %423 = vector.extract_strided_slice %13 {offsets = [48, 64], sizes = [8, 32], strides = [1, 1]} : vector<64x192xf32> to vector<8x32xf32>
    %424 = vector.extract_strided_slice %419 {offsets = [0, 0], sizes = [8, 32], strides = [1, 1]} : vector<8x192xf32> to vector<8x32xf32>
    %425 = vector.extract_strided_slice %419 {offsets = [0, 32], sizes = [8, 32], strides = [1, 1]} : vector<8x192xf32> to vector<8x32xf32>
    %426 = vector.extract_strided_slice %419 {offsets = [0, 64], sizes = [8, 32], strides = [1, 1]} : vector<8x192xf32> to vector<8x32xf32>
    %427 = vector.extract_strided_slice %417 {offsets = [0, 0], sizes = [8, 32], strides = [1, 1]} : vector<16x32xf32> to vector<8x32xf32>
    %428 = arith.addf %421, %424 : vector<8x32xf32>
    %429 = arith.negf %428 : vector<8x32xf32>
    %430 = math.exp %429 : vector<8x32xf32>
    %cst_88 = arith.constant 1.000000e+00 : f32
    %431 = vector.broadcast %cst_88 : f32 to vector<8x32xf32>
    %432 = arith.addf %431, %430 : vector<8x32xf32>
    %433 = arith.divf %431, %432 : vector<8x32xf32>
    %434 = arith.addf %422, %425 : vector<8x32xf32>
    %435 = arith.negf %434 : vector<8x32xf32>
    %436 = math.exp %435 : vector<8x32xf32>
    %cst_89 = arith.constant 1.000000e+00 : f32
    %437 = vector.broadcast %cst_89 : f32 to vector<8x32xf32>
    %438 = arith.addf %437, %436 : vector<8x32xf32>
    %439 = arith.divf %437, %438 : vector<8x32xf32>
    %440 = arith.addf %426, %17 : vector<8x32xf32>
    %441 = arith.mulf %433, %440 : vector<8x32xf32>
    %442 = arith.addf %423, %441 : vector<8x32xf32>
    %443 = math.tanh %442 : vector<8x32xf32>
    %cst_90 = arith.constant 1.000000e+00 : f32
    %444 = vector.broadcast %cst_90 : f32 to vector<8x32xf32>
    %445 = arith.subf %444, %439 : vector<8x32xf32>
    %446 = arith.mulf %445, %443 : vector<8x32xf32>
    %447 = arith.mulf %439, %427 : vector<8x32xf32>
    %448 = arith.addf %446, %447 : vector<8x32xf32>
    %449 = vector.extract_strided_slice %13 {offsets = [8, 96], sizes = [8, 32], strides = [1, 1]} : vector<64x192xf32> to vector<8x32xf32>
    %450 = vector.extract_strided_slice %13 {offsets = [8, 128], sizes = [8, 32], strides = [1, 1]} : vector<64x192xf32> to vector<8x32xf32>
    %451 = vector.extract_strided_slice %13 {offsets = [8, 160], sizes = [8, 32], strides = [1, 1]} : vector<64x192xf32> to vector<8x32xf32>
    %452 = vector.extract_strided_slice %420 {offsets = [0, 96], sizes = [8, 32], strides = [1, 1]} : vector<8x192xf32> to vector<8x32xf32>
    %453 = vector.extract_strided_slice %420 {offsets = [0, 128], sizes = [8, 32], strides = [1, 1]} : vector<8x192xf32> to vector<8x32xf32>
    %454 = vector.extract_strided_slice %420 {offsets = [0, 160], sizes = [8, 32], strides = [1, 1]} : vector<8x192xf32> to vector<8x32xf32>
    %455 = vector.extract_strided_slice %417 {offsets = [8, 0], sizes = [8, 32], strides = [1, 1]} : vector<16x32xf32> to vector<8x32xf32>
    %456 = arith.addf %449, %452 : vector<8x32xf32>
    %457 = arith.negf %456 : vector<8x32xf32>
    %458 = math.exp %457 : vector<8x32xf32>
    %cst_91 = arith.constant 1.000000e+00 : f32
    %459 = vector.broadcast %cst_91 : f32 to vector<8x32xf32>
    %460 = arith.addf %459, %458 : vector<8x32xf32>
    %461 = arith.divf %459, %460 : vector<8x32xf32>
    %462 = arith.addf %450, %453 : vector<8x32xf32>
    %463 = arith.negf %462 : vector<8x32xf32>
    %464 = math.exp %463 : vector<8x32xf32>
    %cst_92 = arith.constant 1.000000e+00 : f32
    %465 = vector.broadcast %cst_92 : f32 to vector<8x32xf32>
    %466 = arith.addf %465, %464 : vector<8x32xf32>
    %467 = arith.divf %465, %466 : vector<8x32xf32>
    %468 = arith.addf %454, %20 : vector<8x32xf32>
    %469 = arith.mulf %461, %468 : vector<8x32xf32>
    %470 = arith.addf %451, %469 : vector<8x32xf32>
    %471 = math.tanh %470 : vector<8x32xf32>
    %cst_93 = arith.constant 1.000000e+00 : f32
    %472 = vector.broadcast %cst_93 : f32 to vector<8x32xf32>
    %473 = arith.subf %472, %467 : vector<8x32xf32>
    %474 = arith.mulf %473, %471 : vector<8x32xf32>
    %475 = arith.mulf %467, %455 : vector<8x32xf32>
    %476 = arith.addf %474, %475 : vector<8x32xf32>
    %c6_94 = arith.constant 6 : index
    %c0_95 = arith.constant 0 : index
    %c0_96 = arith.constant 0 : index
    %477 = vector.load %arg10[%c6_94, %c0_95, %c0_96] : memref<8x8x64xf32, #tpu.memory_space<vmem>>, vector<1x8x32xf32>
    %478 = vector.shape_cast %477 : vector<1x8x32xf32> to vector<8x32xf32>
    %479 = vector.shape_cast %448 : vector<8x32xf32> to vector<1x8x32xf32>
    tpu.vector_store %arg10[%c6_94, %c0_95, %c0_96], %479 {strides = array<i32>} : memref<8x8x64xf32, #tpu.memory_space<vmem>>, vector<1x8x32xf32>,
    %c1_97 = arith.constant 1 : index
    %c0_98 = arith.constant 0 : index
    %c32_99 = arith.constant 32 : index
    %480 = vector.load %arg10[%c1_97, %c0_98, %c32_99] : memref<8x8x64xf32, #tpu.memory_space<vmem>>, vector<1x8x32xf32>
    %481 = vector.shape_cast %480 : vector<1x8x32xf32> to vector<8x32xf32>
    %482 = vector.shape_cast %476 : vector<8x32xf32> to vector<1x8x32xf32>
    tpu.vector_store %arg10[%c1_97, %c0_98, %c32_99], %482 {strides = array<i32>} : memref<8x8x64xf32, #tpu.memory_space<vmem>>, vector<1x8x32xf32>,
    %483 = tpu.concatenate %448, %476 in 0 : vector<8x32xf32>, vector<8x32xf32> -> vector<16x32xf32>
    %cst_100 = arith.constant dense<0.000000e+00> : vector<16x192xf32>
    %484 = tpu.matmul %483, %14, %cst_100 {dimension_numbers = #tpu.dot_dimension_numbers<[1], [0], [0], [1], [0, 0, 1, 1], [], []>} : vector<16x32xf32>, vector<32x192xf32>, vector<16x192xf32> -> vector<16x192xf32>
    %485 = vector.extract_strided_slice %484 {offsets = [0, 0], sizes = [8, 192], strides = [1, 1]} : vector<16x192xf32> to vector<8x192xf32>
    %486 = vector.extract_strided_slice %484 {offsets = [8, 0], sizes = [8, 192], strides = [1, 1]} : vector<16x192xf32> to vector<8x192xf32>
    %487 = vector.extract_strided_slice %13 {offsets = [56, 0], sizes = [8, 32], strides = [1, 1]} : vector<64x192xf32> to vector<8x32xf32>
    %488 = vector.extract_strided_slice %13 {offsets = [56, 32], sizes = [8, 32], strides = [1, 1]} : vector<64x192xf32> to vector<8x32xf32>
    %489 = vector.extract_strided_slice %13 {offsets = [56, 64], sizes = [8, 32], strides = [1, 1]} : vector<64x192xf32> to vector<8x32xf32>
    %490 = vector.extract_strided_slice %485 {offsets = [0, 0], sizes = [8, 32], strides = [1, 1]} : vector<8x192xf32> to vector<8x32xf32>
    %491 = vector.extract_strided_slice %485 {offsets = [0, 32], sizes = [8, 32], strides = [1, 1]} : vector<8x192xf32> to vector<8x32xf32>
    %492 = vector.extract_strided_slice %485 {offsets = [0, 64], sizes = [8, 32], strides = [1, 1]} : vector<8x192xf32> to vector<8x32xf32>
    %493 = vector.extract_strided_slice %483 {offsets = [0, 0], sizes = [8, 32], strides = [1, 1]} : vector<16x32xf32> to vector<8x32xf32>
    %494 = arith.addf %487, %490 : vector<8x32xf32>
    %495 = arith.negf %494 : vector<8x32xf32>
    %496 = math.exp %495 : vector<8x32xf32>
    %cst_101 = arith.constant 1.000000e+00 : f32
    %497 = vector.broadcast %cst_101 : f32 to vector<8x32xf32>
    %498 = arith.addf %497, %496 : vector<8x32xf32>
    %499 = arith.divf %497, %498 : vector<8x32xf32>
    %500 = arith.addf %488, %491 : vector<8x32xf32>
    %501 = arith.negf %500 : vector<8x32xf32>
    %502 = math.exp %501 : vector<8x32xf32>
    %cst_102 = arith.constant 1.000000e+00 : f32
    %503 = vector.broadcast %cst_102 : f32 to vector<8x32xf32>
    %504 = arith.addf %503, %502 : vector<8x32xf32>
    %505 = arith.divf %503, %504 : vector<8x32xf32>
    %506 = arith.addf %492, %17 : vector<8x32xf32>
    %507 = arith.mulf %499, %506 : vector<8x32xf32>
    %508 = arith.addf %489, %507 : vector<8x32xf32>
    %509 = math.tanh %508 : vector<8x32xf32>
    %cst_103 = arith.constant 1.000000e+00 : f32
    %510 = vector.broadcast %cst_103 : f32 to vector<8x32xf32>
    %511 = arith.subf %510, %505 : vector<8x32xf32>
    %512 = arith.mulf %511, %509 : vector<8x32xf32>
    %513 = arith.mulf %505, %493 : vector<8x32xf32>
    %514 = arith.addf %512, %513 : vector<8x32xf32>
    %515 = vector.extract_strided_slice %13 {offsets = [0, 96], sizes = [8, 32], strides = [1, 1]} : vector<64x192xf32> to vector<8x32xf32>
    %516 = vector.extract_strided_slice %13 {offsets = [0, 128], sizes = [8, 32], strides = [1, 1]} : vector<64x192xf32> to vector<8x32xf32>
    %517 = vector.extract_strided_slice %13 {offsets = [0, 160], sizes = [8, 32], strides = [1, 1]} : vector<64x192xf32> to vector<8x32xf32>
    %518 = vector.extract_strided_slice %486 {offsets = [0, 96], sizes = [8, 32], strides = [1, 1]} : vector<8x192xf32> to vector<8x32xf32>
    %519 = vector.extract_strided_slice %486 {offsets = [0, 128], sizes = [8, 32], strides = [1, 1]} : vector<8x192xf32> to vector<8x32xf32>
    %520 = vector.extract_strided_slice %486 {offsets = [0, 160], sizes = [8, 32], strides = [1, 1]} : vector<8x192xf32> to vector<8x32xf32>
    %521 = vector.extract_strided_slice %483 {offsets = [8, 0], sizes = [8, 32], strides = [1, 1]} : vector<16x32xf32> to vector<8x32xf32>
    %522 = arith.addf %515, %518 : vector<8x32xf32>
    %523 = arith.negf %522 : vector<8x32xf32>
    %524 = math.exp %523 : vector<8x32xf32>
    %cst_104 = arith.constant 1.000000e+00 : f32
    %525 = vector.broadcast %cst_104 : f32 to vector<8x32xf32>
    %526 = arith.addf %525, %524 : vector<8x32xf32>
    %527 = arith.divf %525, %526 : vector<8x32xf32>
    %528 = arith.addf %516, %519 : vector<8x32xf32>
    %529 = arith.negf %528 : vector<8x32xf32>
    %530 = math.exp %529 : vector<8x32xf32>
    %cst_105 = arith.constant 1.000000e+00 : f32
    %531 = vector.broadcast %cst_105 : f32 to vector<8x32xf32>
    %532 = arith.addf %531, %530 : vector<8x32xf32>
    %533 = arith.divf %531, %532 : vector<8x32xf32>
    %534 = arith.addf %520, %20 : vector<8x32xf32>
    %535 = arith.mulf %527, %534 : vector<8x32xf32>
    %536 = arith.addf %517, %535 : vector<8x32xf32>
    %537 = math.tanh %536 : vector<8x32xf32>
    %cst_106 = arith.constant 1.000000e+00 : f32
    %538 = vector.broadcast %cst_106 : f32 to vector<8x32xf32>
    %539 = arith.subf %538, %533 : vector<8x32xf32>
    %540 = arith.mulf %539, %537 : vector<8x32xf32>
    %541 = arith.mulf %533, %521 : vector<8x32xf32>
    %542 = arith.addf %540, %541 : vector<8x32xf32>
    %c7_107 = arith.constant 7 : index
    %c0_108 = arith.constant 0 : index
    %c0_109 = arith.constant 0 : index
    %543 = vector.load %arg10[%c7_107, %c0_108, %c0_109] : memref<8x8x64xf32, #tpu.memory_space<vmem>>, vector<1x8x32xf32>
    %544 = vector.shape_cast %543 : vector<1x8x32xf32> to vector<8x32xf32>
    %545 = vector.shape_cast %514 : vector<8x32xf32> to vector<1x8x32xf32>
    tpu.vector_store %arg10[%c7_107, %c0_108, %c0_109], %545 {strides = array<i32>} : memref<8x8x64xf32, #tpu.memory_space<vmem>>, vector<1x8x32xf32>,
    %c0_110 = arith.constant 0 : index
    %c0_111 = arith.constant 0 : index
    %c32_112 = arith.constant 32 : index
    %546 = vector.load %arg10[%c0_110, %c0_111, %c32_112] : memref<8x8x64xf32, #tpu.memory_space<vmem>>, vector<1x8x32xf32>
    %547 = vector.shape_cast %546 : vector<1x8x32xf32> to vector<8x32xf32>
    %548 = vector.shape_cast %542 : vector<8x32xf32> to vector<1x8x32xf32>
    tpu.vector_store %arg10[%c0_110, %c0_111, %c32_112], %548 {strides = array<i32>} : memref<8x8x64xf32, #tpu.memory_space<vmem>>, vector<1x8x32xf32>,
    %549 = tpu.concatenate %514, %542 in 0 : vector<8x32xf32>, vector<8x32xf32> -> vector<16x32xf32>
    %550 = vector.extract_strided_slice %549 {offsets = [0, 0], sizes = [8, 32], strides = [1, 1]} : vector<16x32xf32> to vector<8x32xf32>
    %c0_113 = arith.constant 0 : index
    %c0_114 = arith.constant 0 : index
    %551 = vector.load %arg7[%c0_113, %c0_114] : memref<32x32xf32, #tpu.memory_space<vmem>>, vector<32x32xf32>
    %cst_115 = arith.constant dense<0.000000e+00> : vector<8x32xf32>
    %552 = tpu.matmul %550, %551, %cst_115 {dimension_numbers = #tpu.dot_dimension_numbers<[1], [0], [0], [1], [0, 0, 1, 1], [], []>} : vector<8x32xf32>, vector<32x32xf32>, vector<8x32xf32> -> vector<8x32xf32>
    %553 = vector.extract_strided_slice %549 {offsets = [8, 0], sizes = [8, 32], strides = [1, 1]} : vector<16x32xf32> to vector<8x32xf32>
    %c0_116 = arith.constant 0 : index
    %c0_117 = arith.constant 0 : index
    %554 = vector.load %arg8[%c0_116, %c0_117] : memref<32x32xf32, #tpu.memory_space<vmem>>, vector<32x32xf32>
    %cst_118 = arith.constant dense<0.000000e+00> : vector<8x32xf32>
    %555 = tpu.matmul %553, %554, %cst_118 {dimension_numbers = #tpu.dot_dimension_numbers<[1], [0], [0], [1], [0, 0, 1, 1], [], []>} : vector<8x32xf32>, vector<32x32xf32>, vector<8x32xf32> -> vector<8x32xf32>
    %556 = arith.addf %552, %555 : vector<8x32xf32>
    %c0_119 = arith.constant 0 : index
    %c0_120 = arith.constant 0 : index
    %557 = vector.load %arg9[%c0_119, %c0_120] : memref<1x32xf32, #tpu.memory_space<vmem>>, vector<1x32xf32>
    %558 = vector.broadcast %557 : vector<1x32xf32> to vector<8x32xf32>
    %559 = arith.addf %556, %558 : vector<8x32xf32>
    %560 = math.tanh %559 : vector<8x32xf32>
    %c0_121 = arith.constant 0 : index
    %c0_122 = arith.constant 0 : index
    %561 = vector.load %arg11[%c0_121, %c0_122] : memref<8x32xf32, #tpu.memory_space<vmem>>, vector<8x32xf32>
    tpu.vector_store %arg11[%c0_121, %c0_122], %560 {strides = array<i32>} : memref<8x32xf32, #tpu.memory_space<vmem>>, vector<8x32xf32>,
    return
  }
}

</mosaic_0001>

<llo_original>
// kernel: encoder_forward.1
$region0: #{encoder_forward.1}
  #allocation0 [shape = 'u32[]', space=smem, size = 0x4, offset = 0x4, fixed_abs, tag = 'smem constant byte address 0x4 - core index']
  #allocation1 [shape = 'u32[72,128]{1,0:T(1,128)}', space=vmem, size = 0x9000, scoped, tag = 'internal scratch']
  %s0 = inlined_call_operand.vmem [shape: s32[64,1], index: 0, kind: input, shape index: {}]
  %s1 = inlined_call_operand.vmem [shape: f32[50,16], index: 1, kind: input, shape index: {}]
  %s2 = inlined_call_operand.vmem [shape: f32[16,192], index: 2, kind: input, shape index: {}]
  %s3 = inlined_call_operand.vmem [shape: f32[1,192], index: 3, kind: input, shape index: {}]
  %s4 = inlined_call_operand.vmem [shape: f32[32,192], index: 4, kind: input, shape index: {}]
  %s5 = inlined_call_operand.vmem [shape: f32[1,32], index: 5, kind: input, shape index: {}]
  %s6 = inlined_call_operand.vmem [shape: f32[1,32], index: 6, kind: input, shape index: {}]
  %s7 = inlined_call_operand.vmem [shape: f32[32,32], index: 7, kind: input, shape index: {}]
  %s8 = inlined_call_operand.hbm [shape: f32[32,32], index: 8, kind: input, shape index: {}]
  %s9 = inlined_call_operand.vmem [shape: f32[1,32], index: 9, kind: input, shape index: {}]
  %s10 = inlined_call_operand.hbm [shape: f32[8,8,64], index: 10, kind: output, shape index: {0}]
  %s11 = inlined_call_operand.hbm [shape: f32[8,32], index: 11, kind: output, shape index: {1}]
  %12 = xla_tuple %s10, %s11
  %s13 = sld [smem:[#allocation0]]
  $region62: #{encoder_forward.1} parent=0
    _
  %s15 = ssub.s32 1, %s13
  %s16 = scalar_select 0, %s15, %s13
  $region1: #{encoder_forward.1} parent=0
    #allocation2 [shape = 'u8[16384]{0}', space=vmem, size = 0x4000, scoped, tag = 'input window, operand 8, single buffered']
    #allocation3 [shape = 's32[1]{0}', space=sflag, size = 0x4, scoped, tag = 'scoped memory for encoder_forward.1']
    #allocation4 [shape = 's32[1]{0}', space=sflag, size = 0x4, scoped, tag = 'scoped memory for encoder_forward.1']
    #allocation5 [shape = 'u8[32768]{0}', space=vmem, size = 0x8000, scoped, tag = 'output window, operand 0, single buffered']
    #allocation6 [shape = 'u8[4096]{0}', space=vmem, size = 0x1000, scoped, tag = 'output window, operand 1, single buffered']
    #allocation7 [shape = 's32[1]{0}', space=sflag, size = 0x4, scoped, tag = 'scoped memory for encoder_forward.1']
    %17 = vsyncpa [#allocation3], 0
    %18 = vsyncpa [#allocation4], 0
    %19 = vsyncpa [#allocation7], 0
    // Predicated region
    $region2: #{encoder_forward.1} parent=1 // pred_check
      _
    $region3: #{encoder_forward.1} parent=1 // pred_check_branch
      %21 = sbr.rel (0) target = $region5
    $region4: #{encoder_forward.1} parent=1 // pred_region
      _
    $region5: #{encoder_forward.1} parent=1 // pred_fallthru
      _
    // Predicated region
    $region6: #{encoder_forward.1} parent=1 // pred_check
      _
    $region7: #{encoder_forward.1} parent=1 // pred_check_branch
      %23 = sbr.rel (0) target = $region9
    $region8: #{encoder_forward.1} parent=1 // pred_region
      _
    $region9: #{encoder_forward.1} parent=1 // pred_fallthru
      _
    // Predicated region
    $region10: #{encoder_forward.1} parent=1 // pred_check
      _
    $region11: #{encoder_forward.1} parent=1 // pred_check_branch
      %25 = sbr.rel (0) target = $region13
    $region12: #{encoder_forward.1} parent=1 // pred_region
      _
    $region13: #{encoder_forward.1} parent=1 // pred_fallthru
      _
    // Predicated region
    $region14: #{encoder_forward.1} parent=1 // pred_check
      _
    $region15: #{encoder_forward.1} parent=1 // pred_check_branch
      %27 = sbr.rel (0) target = $region17
    $region16: #{encoder_forward.1} parent=1 // pred_region
      _
    $region17: #{encoder_forward.1} parent=1 // pred_fallthru
      _
    // Predicated region
    $region18: #{encoder_forward.1} parent=1 // pred_check
      _
    $region19: #{encoder_forward.1} parent=1 // pred_check_branch
      %29 = sbr.rel (0) target = $region21
    $region20: #{encoder_forward.1} parent=1 // pred_region
      _
    $region21: #{encoder_forward.1} parent=1 // pred_fallthru
      _
    // Predicated region
    $region22: #{encoder_forward.1} parent=1 // pred_check
      _
    $region23: #{encoder_forward.1} parent=1 // pred_check_branch
      %31 = sbr.rel (0) target = $region25
    $region24: #{encoder_forward.1} parent=1 // pred_region
      _
    $region25: #{encoder_forward.1} parent=1 // pred_fallthru
      _
    // Predicated region
    $region26: #{encoder_forward.1} parent=1 // pred_check
      _
    $region27: #{encoder_forward.1} parent=1 // pred_check_branch
      %33 = sbr.rel (0) target = $region29
    $region28: #{encoder_forward.1} parent=1 // pred_region
      _
    $region29: #{encoder_forward.1} parent=1 // pred_fallthru
      _
    // Predicated region
    $region30: #{encoder_forward.1} parent=1 // pred_check
      _
    $region31: #{encoder_forward.1} parent=1 // pred_check_branch
      %35 = sbr.rel (0) target = $region33
    $region32: #{encoder_forward.1} parent=1 // pred_region
      _
    $region33: #{encoder_forward.1} parent=1 // pred_fallthru
      _
    // Predicated region
    $region34: #{encoder_forward.1} parent=1 // pred_check
      _
    $region35: #{encoder_forward.1} parent=1 // pred_check_branch
      %37 = sbr.rel (0) target = $region37
    $region36: #{encoder_forward.1} parent=1 // pred_region
      %39 = vsyncadd [#allocation3], 0
      %s40 = sshll.u32 %s8, 4
      %s41 = int_to_ptr.hbm [resolvable:$true] %s40
      %s42 = sshll.u32 [#allocation2], 4
      %s43 = int_to_ptr.vmem [resolvable:$true] %s42
      %48 = dma.hbm_to_vmem [thread:$0]  %s41, 512, %s43, [#allocation3], 128, 128, 8
    $region37: #{encoder_forward.1} parent=1 // pred_fallthru
      _
    // Predicated region
    $region38: #{encoder_forward.1} parent=1 // pred_check
      _
    $region39: #{encoder_forward.1} parent=1 // pred_check_branch
      %50 = sbr.rel (0) target = $region41
    $region40: #{encoder_forward.1} parent=1 // pred_region
      _
    $region41: #{encoder_forward.1} parent=1 // pred_fallthru
      _
    // Predicated region
    $region42: #{encoder_forward.1} parent=1 // pred_check
      _
    $region43: #{encoder_forward.1} parent=1 // pred_check_branch
      %52 = sbr.rel (0) target = $region45
    $region44: #{encoder_forward.1} parent=1 // pred_region
      %54 = dma.done [#allocation3], 512
    $region45: #{encoder_forward.1} parent=1 // pred_fallthru
      _
    %v55 = vld [vmem:[%s0] sm:$0xff]
    %v56 = vld [vmem:[%s0 + $0x8] sm:$0xff]
    %v57 = vld [vmem:[%s0 + $0x10] sm:$0xff]
    %v58 = vld [vmem:[%s0 + $0x18] sm:$0xff]
    %v59 = vld [vmem:[%s0 + $0x20] sm:$0xff]
    %v60 = vld [vmem:[%s0 + $0x28] sm:$0xff]
    %v61 = vld [vmem:[%s0 + $0x30] sm:$0xff]
    %v62 = vld [vmem:[%s0 + $0x38] sm:$0xff]
    %v63 = vlaneseq
    %v64 = vand.u32 %v63, 127
    %65 = vset.pattern.permute.xlu0 0
    %66 = vperm.xlu0 %65, %v55
    %v67 = vpop.permute.xlu0 %66
    %68 = vset.pattern.permute.xlu0 0
    %69 = vperm.xlu0 %68, %v56
    %v70 = vpop.permute.xlu0 %69
    %71 = vset.pattern.permute.xlu0 0
    %72 = vperm.xlu0 %71, %v57
    %v73 = vpop.permute.xlu0 %72
    %74 = vset.pattern.permute.xlu0 0
    %75 = vperm.xlu0 %74, %v58
    %v76 = vpop.permute.xlu0 %75
    %77 = vset.pattern.permute.xlu0 0
    %78 = vperm.xlu0 %77, %v59
    %v79 = vpop.permute.xlu0 %78
    %80 = vset.pattern.permute.xlu0 0
    %81 = vperm.xlu0 %80, %v60
    %v82 = vpop.permute.xlu0 %81
    %83 = vset.pattern.permute.xlu0 0
    %84 = vperm.xlu0 %83, %v61
    %v85 = vpop.permute.xlu0 %84
    %86 = vset.pattern.permute.xlu0 0
    %87 = vperm.xlu0 %86, %v62
    %v88 = vpop.permute.xlu0 %87
    %vm89 = vcmp.eq.s32.totalorder %v67, %v64
    %vm90 = vcmp.eq.s32.totalorder %v70, %v64
    %vm91 = vcmp.eq.s32.totalorder %v73, %v64
    %vm92 = vcmp.eq.s32.totalorder %v76, %v64
    %vm93 = vcmp.eq.s32.totalorder %v79, %v64
    %vm94 = vcmp.eq.s32.totalorder %v82, %v64
    %vm95 = vcmp.eq.s32.totalorder %v85, %v64
    %vm96 = vcmp.eq.s32.totalorder %v88, %v64
    %v97 = vsel %vm89, 1.0, 0.0
    %v98 = vsel %vm90, 1.0, 0.0
    %v99 = vsel %vm91, 1.0, 0.0
    %v100 = vsel %vm92, 1.0, 0.0
    %v101 = vsel %vm93, 1.0, 0.0
    %v102 = vsel %vm94, 1.0, 0.0
    %v103 = vsel %vm95, 1.0, 0.0
    %v104 = vsel %vm96, 1.0, 0.0
    %v105 = vld [vmem:[%s1] sm:$0xff]
    %v106 = vld [vmem:[%s1 + $0x8] sm:$0xff]
    %v107 = vld [vmem:[%s1 + $0x10] sm:$0xff]
    %v108 = vld [vmem:[%s1 + $0x18] sm:$0xff]
    %v109 = vld [vmem:[%s1 + $0x20] sm:$0xff]
    %v110 = vld [vmem:[%s1 + $0x28] sm:$0xff]
    %v111 = vld [vmem:[%s1 + $0x30] sm:$0x3]
    %vm112 = vcmask 408576
    %v114 = vsel %vm112, %v97, 0
    %v117 = vsel %vm112, %v98, 0
    %v120 = vsel %vm112, %v99, 0
    %v123 = vsel %vm112, %v100, 0
    %v126 = vsel %vm112, %v101, 0
    %v129 = vsel %vm112, %v102, 0
    %v132 = vsel %vm112, %v103, 0
    %v135 = vsel %vm112, %v104, 0
    %vm137 = vcmask 1041408
    %v139 = vsel %vm137, %v111, 0
    %141 = vmatpush.msra.mxu0 0.0
    %142 = vmatpush.msra.mxu0 0.0
    %143 = vmatpush.msra.mxu0 0.0
    %144 = vmatpush.msra.mxu0 0.0
    %145 = vmatpush.msra.mxu0 0.0
    %146 = vmatpush.msra.mxu0 0.0
    %147 = vmatpush.msra.mxu0 0.0
    %148 = vmatpush.msra.mxu0 0.0
    %149 = vmatpush.msra.mxu0 0.0
    %150 = vmatpush.msra.mxu0 %v139
    %151 = vmatpush.msra.mxu0 %v110
    %152 = vmatpush.msra.mxu0 %v109
    %153 = vmatpush.msra.mxu0 %v108
    %154 = vmatpush.msra.mxu0 %v107
    %155 = vmatpush.msra.mxu0 %v106
    %156 = vmatpush.msra.mxu0 %v105
    %157 = vmatmul.f32.gmra.mxu0 %v114
    %v158 = vpop.f32.mrf.mxu0
    %v159 = vadd.f32 0.0, %v158
    %160 = vmatmul.f32.gmra.mxu0 %v117
    %v161 = vpop.f32.mrf.mxu0
    %v162 = vadd.f32 0.0, %v161
    %163 = vmatmul.f32.gmra.mxu0 %v120
    %v164 = vpop.f32.mrf.mxu0
    %v165 = vadd.f32 0.0, %v164
    %166 = vmatmul.f32.gmra.mxu0 %v123
    %v167 = vpop.f32.mrf.mxu0
    %v168 = vadd.f32 0.0, %v167
    %169 = vmatmul.f32.gmra.mxu0 %v126
    %v170 = vpop.f32.mrf.mxu0
    %v171 = vadd.f32 0.0, %v170
    %172 = vmatmul.f32.gmra.mxu0 %v129
    %v173 = vpop.f32.mrf.mxu0
    %v174 = vadd.f32 0.0, %v173
    %175 = vmatmul.f32.gmra.mxu0 %v132
    %v176 = vpop.f32.mrf.mxu0
    %v177 = vadd.f32 0.0, %v176
    %178 = vmatmul.f32.gmra.mxu0 %v135
    %v179 = vpop.f32.mrf.mxu0
    %v180 = vadd.f32 0.0, %v179
    %181 = vdwg.mxu0
    %v182 = vld [vmem:[%s2] sm:$0xff]
    %v183 = vld [vmem:[%s2 + $0x8] sm:$0xff]
    %v184 = vld [vmem:[%s2 + $0x10] sm:$0xff]
    %v185 = vld [vmem:[%s2 + $0x18] sm:$0xff]
    %v186 = vld [vmem:[%s3] sm:$0x3]
    %v188 = vperm.slane %v186, 0
    %v189 = vperm.slane %v186, 1
    %vm192 = vcmask 130048
    %v194 = vsel %vm192, %v159, 0
    %v197 = vsel %vm192, %v162, 0
    %v200 = vsel %vm192, %v165, 0
    %v203 = vsel %vm192, %v168, 0
    %v206 = vsel %vm192, %v171, 0
    %v209 = vsel %vm192, %v174, 0
    %v212 = vsel %vm192, %v177, 0
    %v215 = vsel %vm192, %v180, 0
    %217 = vmatpush.msra.mxu0 0.0
    %218 = vmatpush.msra.mxu0 0.0
    %219 = vmatpush.msra.mxu0 0.0
    %220 = vmatpush.msra.mxu0 0.0
    %221 = vmatpush.msra.mxu0 0.0
    %222 = vmatpush.msra.mxu0 0.0
    %223 = vmatpush.msra.mxu0 0.0
    %224 = vmatpush.msra.mxu0 0.0
    %225 = vmatpush.msra.mxu0 0.0
    %226 = vmatpush.msra.mxu0 0.0
    %227 = vmatpush.msra.mxu0 0.0
    %228 = vmatpush.msra.mxu0 0.0
    %229 = vmatpush.msra.mxu0 0.0
    %230 = vmatpush.msra.mxu0 0.0
    %231 = vmatpush.msra.mxu0 %v184
    %232 = vmatpush.msra.mxu0 %v182
    %233 = vmatmul.f32.gmra.mxu0 %v194
    %v234 = vpop.f32.mrf.mxu0
    %v235 = vadd.f32 %v188, %v234
    %236 = vmatmul.f32.gmra.mxu0 %v197
    %v237 = vpop.f32.mrf.mxu0
    %v238 = vadd.f32 %v188, %v237
    %239 = vmatmul.f32.gmra.mxu0 %v200
    %v240 = vpop.f32.mrf.mxu0
    %v241 = vadd.f32 %v188, %v240
    %242 = vmatmul.f32.gmra.mxu0 %v203
    %v243 = vpop.f32.mrf.mxu0
    %v244 = vadd.f32 %v188, %v243
    %245 = vmatmul.f32.gmra.mxu0 %v206
    %v246 = vpop.f32.mrf.mxu0
    %v247 = vadd.f32 %v188, %v246
    %248 = vmatmul.f32.gmra.mxu0 %v209
    %v249 = vpop.f32.mrf.mxu0
    %v250 = vadd.f32 %v188, %v249
    %251 = vmatmul.f32.gmra.mxu0 %v212
    %v252 = vpop.f32.mrf.mxu0
    %v253 = vadd.f32 %v188, %v252
    %254 = vmatmul.f32.gmra.mxu0 %v215
    %v255 = vpop.f32.mrf.mxu0
    %v256 = vadd.f32 %v188, %v255
    %257 = vdwg.mxu0
    %258 = vmatpush.msra.mxu0 0.0
    %259 = vmatpush.msra.mxu0 0.0
    %260 = vmatpush.msra.mxu0 0.0
    %261 = vmatpush.msra.mxu0 0.0
    %262 = vmatpush.msra.mxu0 0.0
    %263 = vmatpush.msra.mxu0 0.0
    %264 = vmatpush.msra.mxu0 0.0
    %265 = vmatpush.msra.mxu0 0.0
    %266 = vmatpush.msra.mxu0 0.0
    %267 = vmatpush.msra.mxu0 0.0
    %268 = vmatpush.msra.mxu0 0.0
    %269 = vmatpush.msra.mxu0 0.0
    %270 = vmatpush.msra.mxu0 0.0
    %271 = vmatpush.msra.mxu0 0.0
    %272 = vmatpush.msra.mxu0 %v185
    %273 = vmatpush.msra.mxu0 %v183
    %274 = vmatmul.f32.gmra.mxu0 %v194
    %v275 = vpop.f32.mrf.mxu0
    %v276 = vadd.f32 %v189, %v275
    %277 = vmatmul.f32.gmra.mxu0 %v197
    %v278 = vpop.f32.mrf.mxu0
    %v279 = vadd.f32 %v189, %v278
    %280 = vmatmul.f32.gmra.mxu0 %v200
    %v281 = vpop.f32.mrf.mxu0
    %v282 = vadd.f32 %v189, %v281
    %283 = vmatmul.f32.gmra.mxu0 %v203
    %v284 = vpop.f32.mrf.mxu0
    %v285 = vadd.f32 %v189, %v284
    %286 = vmatmul.f32.gmra.mxu0 %v206
    %v287 = vpop.f32.mrf.mxu0
    %v288 = vadd.f32 %v189, %v287
    %289 = vmatmul.f32.gmra.mxu0 %v209
    %v290 = vpop.f32.mrf.mxu0
    %v291 = vadd.f32 %v189, %v290
    %292 = vmatmul.f32.gmra.mxu0 %v212
    %v293 = vpop.f32.mrf.mxu0
    %v294 = vadd.f32 %v189, %v293
    %295 = vmatmul.f32.gmra.mxu0 %v215
    %v296 = vpop.f32.mrf.mxu0
    %v297 = vadd.f32 %v189, %v296
    %298 = vdwg.mxu0
    %v299 = vld [vmem:[%s4] sm:$0xff]
    %v300 = vld [vmem:[%s4 + $0x8] sm:$0xff]
    %v301 = vld [vmem:[%s4 + $0x10] sm:$0xff]
    %v302 = vld [vmem:[%s4 + $0x18] sm:$0xff]
    %v303 = vld [vmem:[%s4 + $0x20] sm:$0xff]
    %v304 = vld [vmem:[%s4 + $0x28] sm:$0xff]
    %v305 = vld [vmem:[%s4 + $0x30] sm:$0xff]
    %v306 = vld [vmem:[%s4 + $0x38] sm:$0xff]
    %v307 = vld [vmem:[%s5] sm:$0x1]
    %v309 = vperm.slane %v307, 0
    %v310 = vld [vmem:[%s6] sm:$0x1]
    %v312 = vperm.slane %v310, 0
    %vm313 = vcmask 261120
    %v315 = vsel %vm313, 0.0, 0
    %317 = vmatpush.msra.mxu0 0.0
    %318 = vmatpush.msra.mxu0 0.0
    %319 = vmatpush.msra.mxu0 0.0
    %320 = vmatpush.msra.mxu0 0.0
    %321 = vmatpush.msra.mxu0 0.0
    %322 = vmatpush.msra.mxu0 0.0
    %323 = vmatpush.msra.mxu0 0.0
    %324 = vmatpush.msra.mxu0 0.0
    %325 = vmatpush.msra.mxu0 0.0
    %326 = vmatpush.msra.mxu0 0.0
    %327 = vmatpush.msra.mxu0 0.0
    %328 = vmatpush.msra.mxu0 0.0
    %329 = vmatpush.msra.mxu0 %v305
    %330 = vmatpush.msra.mxu0 %v303
    %331 = vmatpush.msra.mxu0 %v301
    %332 = vmatpush.msra.mxu0 %v299
    %333 = vmatmul.f32.gmra.mxu0 %v315
    %v334 = vpop.f32.mrf.mxu0
    %v335 = vadd.f32 0.0, %v334
    %336 = vmatmul.f32.gmra.mxu0 %v315
    %v337 = vpop.f32.mrf.mxu0
    %v338 = vadd.f32 0.0, %v337
    %339 = vdwg.mxu0
    %340 = vmatpush.msra.mxu0 0.0
    %341 = vmatpush.msra.mxu0 0.0
    %342 = vmatpush.msra.mxu0 0.0
    %343 = vmatpush.msra.mxu0 0.0
    %344 = vmatpush.msra.mxu0 0.0
    %345 = vmatpush.msra.mxu0 0.0
    %346 = vmatpush.msra.mxu0 0.0
    %347 = vmatpush.msra.mxu0 0.0
    %348 = vmatpush.msra.mxu0 0.0
    %349 = vmatpush.msra.mxu0 0.0
    %350 = vmatpush.msra.mxu0 0.0
    %351 = vmatpush.msra.mxu0 0.0
    %352 = vmatpush.msra.mxu0 %v306
    %353 = vmatpush.msra.mxu0 %v304
    %354 = vmatpush.msra.mxu0 %v302
    %355 = vmatpush.msra.mxu0 %v300
    %356 = vmatmul.f32.gmra.mxu0 %v315
    %v357 = vpop.f32.mrf.mxu0
    %358 = vmatmul.f32.gmra.mxu0 %v315
    %v359 = vpop.f32.mrf.mxu0
    %v360 = vadd.f32 0.0, %v359
    %361 = vdwg.mxu0
    %v362 = vadd.f32 %v235, %v335
    %v363 = vxor.u32 %v362, 2147483648
    %v364 = vmul.f32 %v363, 1.442695
    %v365 = vpow.pop %v364
    %v366 = vadd.f32 %v365, 1.0
    %v367 = vrcp.pop %v366
    %v368 = vmul.f32 %v366, %v367
    %v369 = vsub.f32 1.0, %v368
    %v370 = vmul.f32 %v367, %v369
    %v371 = vadd.f32 %v367, %v370
    %vm372 = vweird.f32 %v366
    %vm373 = vweird.f32 %v367
    %vm374 = vmor %vm372, %vm373
    %v375 = vsel %vm374, %v367, %v371
    %v376 = vand.u32 2147483647, %v366
    %vm377 = vcmp.eq.f32.partialorder %v376, 8.507059e+37
    %v378 = vand.u32 %v366, 2147483648
    %v379 = vor.u32 1.1754944e-38, %v378
    %v380 = vsel %vm377, %v379, %v375
    %v381 = vmul.f32 1.0, %v380
    %382 = vrot.lane.b32.xlu0 %v309, 64
    %v383 = vpop.permute.xlu0 %382
    %v385 = vadd.f32 %v335, %v383
    %387 = vrot.lane.b32.xlu0 %v385, 64
    %v388 = vpop.permute.xlu0 %387
    %v390 = vmul.f32 %v381, %v388
    %392 = vrot.lane.b32.xlu0 %v390, 64
    %v393 = vpop.permute.xlu0 %392
    %v395 = vadd.f32 %v235, %v393
    %v396 = vtanh.pop %v395
    %v397 = vsub.f32 1.0, %v381
    %399 = vrot.lane.b32.xlu0 %v396, 96
    %v400 = vpop.permute.xlu0 %399
    %v402 = vmul.f32 %v397, %v400
    %v403 = vmul.f32 %v381, 0.0
    %v404 = vadd.f32 %v402, %v403
    %v405 = vadd.f32 %v256, %v338
    %v406 = vxor.u32 %v405, 2147483648
    %v407 = vmul.f32 %v406, 1.442695
    %v408 = vpow.pop %v407
    %v409 = vadd.f32 %v408, 1.0
    %v410 = vrcp.pop %v409
    %v411 = vmul.f32 %v409, %v410
    %v412 = vsub.f32 1.0, %v411
    %v413 = vmul.f32 %v410, %v412
    %v414 = vadd.f32 %v410, %v413
    %vm415 = vweird.f32 %v409
    %vm416 = vweird.f32 %v410
    %vm417 = vmor %vm415, %vm416
    %v418 = vsel %vm417, %v410, %v414
    %v419 = vand.u32 2147483647, %v409
    %vm420 = vcmp.eq.f32.partialorder %v419, 8.507059e+37
    %v421 = vand.u32 %v409, 2147483648
    %v422 = vor.u32 1.1754944e-38, %v421
    %v423 = vsel %vm420, %v422, %v418
    %v424 = vmul.f32 1.0, %v423
    %v425 = vadd.f32 %v297, %v360
    %v426 = vxor.u32 %v425, 2147483648
    %v427 = vmul.f32 %v426, 1.442695
    %v428 = vpow.pop %v427
    %v429 = vadd.f32 %v428, 1.0
    %v430 = vrcp.pop %v429
    %v431 = vmul.f32 %v429, %v430
    %v432 = vsub.f32 1.0, %v431
    %v433 = vmul.f32 %v430, %v432
    %v434 = vadd.f32 %v430, %v433
    %vm435 = vweird.f32 %v429
    %vm436 = vweird.f32 %v430
    %vm437 = vmor %vm435, %vm436
    %v438 = vsel %vm437, %v430, %v434
    %v439 = vand.u32 2147483647, %v429
    %vm440 = vcmp.eq.f32.partialorder %v439, 8.507059e+37
    %v441 = vand.u32 %v429, 2147483648
    %v442 = vor.u32 1.1754944e-38, %v441
    %v443 = vsel %vm440, %v442, %v438
    %v444 = vmul.f32 1.0, %v443
    %445 = vrot.lane.b32.xlu0 %v312, 32
    %v446 = vpop.permute.xlu0 %445
    %v448 = vadd.f32 %v360, %v446
    %450 = vrot.lane.b32.xlu0 %v448, 64
    %v451 = vpop.permute.xlu0 %450
    %v453 = vmul.f32 %v424, %v451
    %455 = vrot.lane.b32.xlu0 %v453, 64
    %v456 = vpop.permute.xlu0 %455
    %v458 = vadd.f32 %v297, %v456
    %v459 = vtanh.pop %v458
    %v460 = vsub.f32 1.0, %v444
    %462 = vrot.lane.b32.xlu0 %v459, 96
    %v463 = vpop.permute.xlu0 %462
    %v465 = vmul.f32 %v460, %v463
    %v466 = vmul.f32 %v444, 0.0
    %v467 = vadd.f32 %v465, %v466
    %469 = vrot.lane.b32.xlu0 %v404, 96
    %v470 = vpop.permute.xlu0 %469
    %472 = vst.msk [vmem:[#allocation5] sm:$0xff] %vm313, %v470
    %474 = vrot.lane.b32.xlu0 %v467, 32
    %v475 = vpop.permute.xlu0 %474
    %s477 = scalar_lea.vmem [#allocation5], 56
    %vm478 = vcmask 523520
    %479 = vst.msk [vmem:[%s477] sm:$0xff] %vm478, %v475
    %480 = vrot.lane.b32.xlu0 %v475, 96
    %v481 = vpop.permute.xlu0 %480
    %v482 = vsel %vm313, %v470, 0
    %v484 = vsel %vm313, %v481, 0
    %486 = vmatpush.msra.mxu0 0.0
    %487 = vmatpush.msra.mxu0 0.0
    %488 = vmatpush.msra.mxu0 0.0
    %489 = vmatpush.msra.mxu0 0.0
    %490 = vmatpush.msra.mxu0 0.0
    %491 = vmatpush.msra.mxu0 0.0
    %492 = vmatpush.msra.mxu0 0.0
    %493 = vmatpush.msra.mxu0 0.0
    %494 = vmatpush.msra.mxu0 0.0
    %495 = vmatpush.msra.mxu0 0.0
    %496 = vmatpush.msra.mxu0 0.0
    %497 = vmatpush.msra.mxu0 0.0
    %498 = vmatpush.msra.mxu0 %v305
    %499 = vmatpush.msra.mxu0 %v303
    %500 = vmatpush.msra.mxu0 %v301
    %501 = vmatpush.msra.mxu0 %v299
    %502 = vmatmul.f32.gmra.mxu0 %v482
    %v503 = vpop.f32.mrf.mxu0
    %v504 = vadd.f32 0.0, %v503
    %505 = vmatmul.f32.gmra.mxu0 %v484
    %v506 = vpop.f32.mrf.mxu0
    %v507 = vadd.f32 0.0, %v506
    %508 = vdwg.mxu0
    %509 = vmatpush.msra.mxu0 0.0
    %510 = vmatpush.msra.mxu0 0.0
    %511 = vmatpush.msra.mxu0 0.0
    %512 = vmatpush.msra.mxu0 0.0
    %513 = vmatpush.msra.mxu0 0.0
    %514 = vmatpush.msra.mxu0 0.0
    %515 = vmatpush.msra.mxu0 0.0
    %516 = vmatpush.msra.mxu0 0.0
    %517 = vmatpush.msra.mxu0 0.0
    %518 = vmatpush.msra.mxu0 0.0
    %519 = vmatpush.msra.mxu0 0.0
    %520 = vmatpush.msra.mxu0 0.0
    %521 = vmatpush.msra.mxu0 %v306
    %522 = vmatpush.msra.mxu0 %v304
    %523 = vmatpush.msra.mxu0 %v302
    %524 = vmatpush.msra.mxu0 %v300
    %525 = vmatmul.f32.gmra.mxu0 %v482
    %v526 = vpop.f32.mrf.mxu0
    %527 = vmatmul.f32.gmra.mxu0 %v484
    %v528 = vpop.f32.mrf.mxu0
    %v529 = vadd.f32 0.0, %v528
    %530 = vdwg.mxu0
    %v531 = vadd.f32 %v238, %v504
    %v532 = vxor.u32 %v531, 2147483648
    %v533 = vmul.f32 %v532, 1.442695
    %v534 = vpow.pop %v533
    %v535 = vadd.f32 %v534, 1.0
    %v536 = vrcp.pop %v535
    %v537 = vmul.f32 %v535, %v536
    %v538 = vsub.f32 1.0, %v537
    %v539 = vmul.f32 %v536, %v538
    %v540 = vadd.f32 %v536, %v539
    %vm541 = vweird.f32 %v535
    %vm542 = vweird.f32 %v536
    %vm543 = vmor %vm541, %vm542
    %v544 = vsel %vm543, %v536, %v540
    %v545 = vand.u32 2147483647, %v535
    %vm546 = vcmp.eq.f32.partialorder %v545, 8.507059e+37
    %v547 = vand.u32 %v535, 2147483648
    %v548 = vor.u32 1.1754944e-38, %v547
    %v549 = vsel %vm546, %v548, %v544
    %v550 = vmul.f32 1.0, %v549
    %v551 = vadd.f32 %v504, %v383
    %553 = vrot.lane.b32.xlu0 %v551, 64
    %v554 = vpop.permute.xlu0 %553
    %v556 = vmul.f32 %v550, %v554
    %558 = vrot.lane.b32.xlu0 %v556, 64
    %v559 = vpop.permute.xlu0 %558
    %v561 = vadd.f32 %v238, %v559
    %v562 = vtanh.pop %v561
    %v563 = vsub.f32 1.0, %v550
    %565 = vrot.lane.b32.xlu0 %v562, 96
    %v566 = vpop.permute.xlu0 %565
    %v568 = vmul.f32 %v563, %v566
    %v569 = vmul.f32 %v550, %v404
    %v570 = vadd.f32 %v568, %v569
    %v571 = vadd.f32 %v253, %v507
    %v572 = vxor.u32 %v571, 2147483648
    %v573 = vmul.f32 %v572, 1.442695
    %v574 = vpow.pop %v573
    %v575 = vadd.f32 %v574, 1.0
    %v576 = vrcp.pop %v575
    %v577 = vmul.f32 %v575, %v576
    %v578 = vsub.f32 1.0, %v577
    %v579 = vmul.f32 %v576, %v578
    %v580 = vadd.f32 %v576, %v579
    %vm581 = vweird.f32 %v575
    %vm582 = vweird.f32 %v576
    %vm583 = vmor %vm581, %vm582
    %v584 = vsel %vm583, %v576, %v580
    %v585 = vand.u32 2147483647, %v575
    %vm586 = vcmp.eq.f32.partialorder %v585, 8.507059e+37
    %v587 = vand.u32 %v575, 2147483648
    %v588 = vor.u32 1.1754944e-38, %v587
    %v589 = vsel %vm586, %v588, %v584
    %v590 = vmul.f32 1.0, %v589
    %v591 = vadd.f32 %v294, %v529
    %v592 = vxor.u32 %v591, 2147483648
    %v593 = vmul.f32 %v592, 1.442695
    %v594 = vpow.pop %v593
    %v595 = vadd.f32 %v594, 1.0
    %v596 = vrcp.pop %v595
    %v597 = vmul.f32 %v595, %v596
    %v598 = vsub.f32 1.0, %v597
    %v599 = vmul.f32 %v596, %v598
    %v600 = vadd.f32 %v596, %v599
    %vm601 = vweird.f32 %v595
    %vm602 = vweird.f32 %v596
    %vm603 = vmor %vm601, %vm602
    %v604 = vsel %vm603, %v596, %v600
    %v605 = vand.u32 2147483647, %v595
    %vm606 = vcmp.eq.f32.partialorder %v605, 8.507059e+37
    %v607 = vand.u32 %v595, 2147483648
    %v608 = vor.u32 1.1754944e-38, %v607
    %v609 = vsel %vm606, %v608, %v604
    %v610 = vmul.f32 1.0, %v609
    %v611 = vadd.f32 %v529, %v446
    %613 = vrot.lane.b32.xlu0 %v611, 64
    %v614 = vpop.permute.xlu0 %613
    %v616 = vmul.f32 %v590, %v614
    %618 = vrot.lane.b32.xlu0 %v616, 64
    %v619 = vpop.permute.xlu0 %618
    %v621 = vadd.f32 %v294, %v619
    %v622 = vtanh.pop %v621
    %v623 = vsub.f32 1.0, %v610
    %625 = vrot.lane.b32.xlu0 %v622, 96
    %v626 = vpop.permute.xlu0 %625
    %v628 = vmul.f32 %v623, %v626
    %v630 = vmul.f32 %v610, %v481
    %v631 = vadd.f32 %v628, %v630
    %633 = vrot.lane.b32.xlu0 %v570, 96
    %v634 = vpop.permute.xlu0 %633
    %s636 = scalar_lea.vmem [#allocation5], 8
    %637 = vst.msk [vmem:[%s636] sm:$0xff] %vm313, %v634
    %639 = vrot.lane.b32.xlu0 %v631, 32
    %v640 = vpop.permute.xlu0 %639
    %s642 = scalar_lea.vmem [#allocation5], 48
    %643 = vst.msk [vmem:[%s642] sm:$0xff] %vm478, %v640
    %644 = vrot.lane.b32.xlu0 %v640, 96
    %v645 = vpop.permute.xlu0 %644
    %v646 = vsel %vm313, %v634, 0
    %v648 = vsel %vm313, %v645, 0
    %650 = vmatpush.msra.mxu0 0.0
    %651 = vmatpush.msra.mxu0 0.0
    %652 = vmatpush.msra.mxu0 0.0
    %653 = vmatpush.msra.mxu0 0.0
    %654 = vmatpush.msra.mxu0 0.0
    %655 = vmatpush.msra.mxu0 0.0
    %656 = vmatpush.msra.mxu0 0.0
    %657 = vmatpush.msra.mxu0 0.0
    %658 = vmatpush.msra.mxu0 0.0
    %659 = vmatpush.msra.mxu0 0.0
    %660 = vmatpush.msra.mxu0 0.0
    %661 = vmatpush.msra.mxu0 0.0
    %662 = vmatpush.msra.mxu0 %v305
    %663 = vmatpush.msra.mxu0 %v303
    %664 = vmatpush.msra.mxu0 %v301
    %665 = vmatpush.msra.mxu0 %v299
    %666 = vmatmul.f32.gmra.mxu0 %v646
    %v667 = vpop.f32.mrf.mxu0
    %v668 = vadd.f32 0.0, %v667
    %669 = vmatmul.f32.gmra.mxu0 %v648
    %v670 = vpop.f32.mrf.mxu0
    %v671 = vadd.f32 0.0, %v670
    %672 = vdwg.mxu0
    %673 = vmatpush.msra.mxu0 0.0
    %674 = vmatpush.msra.mxu0 0.0
    %675 = vmatpush.msra.mxu0 0.0
    %676 = vmatpush.msra.mxu0 0.0
    %677 = vmatpush.msra.mxu0 0.0
    %678 = vmatpush.msra.mxu0 0.0
    %679 = vmatpush.msra.mxu0 0.0
    %680 = vmatpush.msra.mxu0 0.0
    %681 = vmatpush.msra.mxu0 0.0
    %682 = vmatpush.msra.mxu0 0.0
    %683 = vmatpush.msra.mxu0 0.0
    %684 = vmatpush.msra.mxu0 0.0
    %685 = vmatpush.msra.mxu0 %v306
    %686 = vmatpush.msra.mxu0 %v304
    %687 = vmatpush.msra.mxu0 %v302
    %688 = vmatpush.msra.mxu0 %v300
    %689 = vmatmul.f32.gmra.mxu0 %v646
    %v690 = vpop.f32.mrf.mxu0
    %691 = vmatmul.f32.gmra.mxu0 %v648
    %v692 = vpop.f32.mrf.mxu0
    %v693 = vadd.f32 0.0, %v692
    %694 = vdwg.mxu0
    %v695 = vadd.f32 %v241, %v668
    %v696 = vxor.u32 %v695, 2147483648
    %v697 = vmul.f32 %v696, 1.442695
    %v698 = vpow.pop %v697
    %v699 = vadd.f32 %v698, 1.0
    %v700 = vrcp.pop %v699
    %v701 = vmul.f32 %v699, %v700
    %v702 = vsub.f32 1.0, %v701
    %v703 = vmul.f32 %v700, %v702
    %v704 = vadd.f32 %v700, %v703
    %vm705 = vweird.f32 %v699
    %vm706 = vweird.f32 %v700
    %vm707 = vmor %vm705, %vm706
    %v708 = vsel %vm707, %v700, %v704
    %v709 = vand.u32 2147483647, %v699
    %vm710 = vcmp.eq.f32.partialorder %v709, 8.507059e+37
    %v711 = vand.u32 %v699, 2147483648
    %v712 = vor.u32 1.1754944e-38, %v711
    %v713 = vsel %vm710, %v712, %v708
    %v714 = vmul.f32 1.0, %v713
    %v715 = vadd.f32 %v668, %v383
    %717 = vrot.lane.b32.xlu0 %v715, 64
    %v718 = vpop.permute.xlu0 %717
    %v720 = vmul.f32 %v714, %v718
    %722 = vrot.lane.b32.xlu0 %v720, 64
    %v723 = vpop.permute.xlu0 %722
    %v725 = vadd.f32 %v241, %v723
    %v726 = vtanh.pop %v725
    %v727 = vsub.f32 1.0, %v714
    %729 = vrot.lane.b32.xlu0 %v726, 96
    %v730 = vpop.permute.xlu0 %729
    %v732 = vmul.f32 %v727, %v730
    %v733 = vmul.f32 %v714, %v570
    %v734 = vadd.f32 %v732, %v733
    %v735 = vadd.f32 %v250, %v671
    %v736 = vxor.u32 %v735, 2147483648
    %v737 = vmul.f32 %v736, 1.442695
    %v738 = vpow.pop %v737
    %v739 = vadd.f32 %v738, 1.0
    %v740 = vrcp.pop %v739
    %v741 = vmul.f32 %v739, %v740
    %v742 = vsub.f32 1.0, %v741
    %v743 = vmul.f32 %v740, %v742
    %v744 = vadd.f32 %v740, %v743
    %vm745 = vweird.f32 %v739
    %vm746 = vweird.f32 %v740
    %vm747 = vmor %vm745, %vm746
    %v748 = vsel %vm747, %v740, %v744
    %v749 = vand.u32 2147483647, %v739
    %vm750 = vcmp.eq.f32.partialorder %v749, 8.507059e+37
    %v751 = vand.u32 %v739, 2147483648
    %v752 = vor.u32 1.1754944e-38, %v751
    %v753 = vsel %vm750, %v752, %v748
    %v754 = vmul.f32 1.0, %v753
    %v755 = vadd.f32 %v291, %v693
    %v756 = vxor.u32 %v755, 2147483648
    %v757 = vmul.f32 %v756, 1.442695
    %v758 = vpow.pop %v757
    %v759 = vadd.f32 %v758, 1.0
    %v760 = vrcp.pop %v759
    %v761 = vmul.f32 %v759, %v760
    %v762 = vsub.f32 1.0, %v761
    %v763 = vmul.f32 %v760, %v762
    %v764 = vadd.f32 %v760, %v763
    %vm765 = vweird.f32 %v759
    %vm766 = vweird.f32 %v760
    %vm767 = vmor %vm765, %vm766
    %v768 = vsel %vm767, %v760, %v764
    %v769 = vand.u32 2147483647, %v759
    %vm770 = vcmp.eq.f32.partialorder %v769, 8.507059e+37
    %v771 = vand.u32 %v759, 2147483648
    %v772 = vor.u32 1.1754944e-38, %v771
    %v773 = vsel %vm770, %v772, %v768
    %v774 = vmul.f32 1.0, %v773
    %v775 = vadd.f32 %v693, %v446
    %777 = vrot.lane.b32.xlu0 %v775, 64
    %v778 = vpop.permute.xlu0 %777
    %v780 = vmul.f32 %v754, %v778
    %782 = vrot.lane.b32.xlu0 %v780, 64
    %v783 = vpop.permute.xlu0 %782
    %v785 = vadd.f32 %v291, %v783
    %v786 = vtanh.pop %v785
    %v787 = vsub.f32 1.0, %v774
    %789 = vrot.lane.b32.xlu0 %v786, 96
    %v790 = vpop.permute.xlu0 %789
    %v792 = vmul.f32 %v787, %v790
    %v794 = vmul.f32 %v774, %v645
    %v795 = vadd.f32 %v792, %v794
    %797 = vrot.lane.b32.xlu0 %v734, 96
    %v798 = vpop.permute.xlu0 %797
    %s800 = scalar_lea.vmem [#allocation5], 16
    %801 = vst.msk [vmem:[%s800] sm:$0xff] %vm313, %v798
    %803 = vrot.lane.b32.xlu0 %v795, 32
    %v804 = vpop.permute.xlu0 %803
    %s806 = scalar_lea.vmem [#allocation5], 40
    %807 = vst.msk [vmem:[%s806] sm:$0xff] %vm478, %v804
    %808 = vrot.lane.b32.xlu0 %v804, 96
    %v809 = vpop.permute.xlu0 %808
    %v810 = vsel %vm313, %v798, 0
    %v812 = vsel %vm313, %v809, 0
    %814 = vmatpush.msra.mxu0 0.0
    %815 = vmatpush.msra.mxu0 0.0
    %816 = vmatpush.msra.mxu0 0.0
    %817 = vmatpush.msra.mxu0 0.0
    %818 = vmatpush.msra.mxu0 0.0
    %819 = vmatpush.msra.mxu0 0.0
    %820 = vmatpush.msra.mxu0 0.0
    %821 = vmatpush.msra.mxu0 0.0
    %822 = vmatpush.msra.mxu0 0.0
    %823 = vmatpush.msra.mxu0 0.0
    %824 = vmatpush.msra.mxu0 0.0
    %825 = vmatpush.msra.mxu0 0.0
    %826 = vmatpush.msra.mxu0 %v305
    %827 = vmatpush.msra.mxu0 %v303
    %828 = vmatpush.msra.mxu0 %v301
    %829 = vmatpush.msra.mxu0 %v299
    %830 = vmatmul.f32.gmra.mxu0 %v810
    %v831 = vpop.f32.mrf.mxu0
    %v832 = vadd.f32 0.0, %v831
    %833 = vmatmul.f32.gmra.mxu0 %v812
    %v834 = vpop.f32.mrf.mxu0
    %v835 = vadd.f32 0.0, %v834
    %836 = vdwg.mxu0
    %837 = vmatpush.msra.mxu0 0.0
    %838 = vmatpush.msra.mxu0 0.0
    %839 = vmatpush.msra.mxu0 0.0
    %840 = vmatpush.msra.mxu0 0.0
    %841 = vmatpush.msra.mxu0 0.0
    %842 = vmatpush.msra.mxu0 0.0
    %843 = vmatpush.msra.mxu0 0.0
    %844 = vmatpush.msra.mxu0 0.0
    %845 = vmatpush.msra.mxu0 0.0
    %846 = vmatpush.msra.mxu0 0.0
    %847 = vmatpush.msra.mxu0 0.0
    %848 = vmatpush.msra.mxu0 0.0
    %849 = vmatpush.msra.mxu0 %v306
    %850 = vmatpush.msra.mxu0 %v304
    %851 = vmatpush.msra.mxu0 %v302
    %852 = vmatpush.msra.mxu0 %v300
    %853 = vmatmul.f32.gmra.mxu0 %v810
    %v854 = vpop.f32.mrf.mxu0
    %855 = vmatmul.f32.gmra.mxu0 %v812
    %v856 = vpop.f32.mrf.mxu0
    %v857 = vadd.f32 0.0, %v856
    %858 = vdwg.mxu0
    %v859 = vadd.f32 %v244, %v832
    %v860 = vxor.u32 %v859, 2147483648
    %v861 = vmul.f32 %v860, 1.442695
    %v862 = vpow.pop %v861
    %v863 = vadd.f32 %v862, 1.0
    %v864 = vrcp.pop %v863
    %v865 = vmul.f32 %v863, %v864
    %v866 = vsub.f32 1.0, %v865
    %v867 = vmul.f32 %v864, %v866
    %v868 = vadd.f32 %v864, %v867
    %vm869 = vweird.f32 %v863
    %vm870 = vweird.f32 %v864
    %vm871 = vmor %vm869, %vm870
    %v872 = vsel %vm871, %v864, %v868
    %v873 = vand.u32 2147483647, %v863
    %vm874 = vcmp.eq.f32.partialorder %v873, 8.507059e+37
    %v875 = vand.u32 %v863, 2147483648
    %v876 = vor.u32 1.1754944e-38, %v875
    %v877 = vsel %vm874, %v876, %v872
    %v878 = vmul.f32 1.0, %v877
    %v879 = vadd.f32 %v832, %v383
    %881 = vrot.lane.b32.xlu0 %v879, 64
    %v882 = vpop.permute.xlu0 %881
    %v884 = vmul.f32 %v878, %v882
    %886 = vrot.lane.b32.xlu0 %v884, 64
    %v887 = vpop.permute.xlu0 %886
    %v889 = vadd.f32 %v244, %v887
    %v890 = vtanh.pop %v889
    %v891 = vsub.f32 1.0, %v878
    %893 = vrot.lane.b32.xlu0 %v890, 96
    %v894 = vpop.permute.xlu0 %893
    %v896 = vmul.f32 %v891, %v894
    %v897 = vmul.f32 %v878, %v734
    %v898 = vadd.f32 %v896, %v897
    %v899 = vadd.f32 %v247, %v835
    %v900 = vxor.u32 %v899, 2147483648
    %v901 = vmul.f32 %v900, 1.442695
    %v902 = vpow.pop %v901
    %v903 = vadd.f32 %v902, 1.0
    %v904 = vrcp.pop %v903
    %v905 = vmul.f32 %v903, %v904
    %v906 = vsub.f32 1.0, %v905
    %v907 = vmul.f32 %v904, %v906
    %v908 = vadd.f32 %v904, %v907
    %vm909 = vweird.f32 %v903
    %vm910 = vweird.f32 %v904
    %vm911 = vmor %vm909, %vm910
    %v912 = vsel %vm911, %v904, %v908
    %v913 = vand.u32 2147483647, %v903
    %vm914 = vcmp.eq.f32.partialorder %v913, 8.507059e+37
    %v915 = vand.u32 %v903, 2147483648
    %v916 = vor.u32 1.1754944e-38, %v915
    %v917 = vsel %vm914, %v916, %v912
    %v918 = vmul.f32 1.0, %v917
    %v919 = vadd.f32 %v288, %v857
    %v920 = vxor.u32 %v919, 2147483648
    %v921 = vmul.f32 %v920, 1.442695
    %v922 = vpow.pop %v921
    %v923 = vadd.f32 %v922, 1.0
    %v924 = vrcp.pop %v923
    %v925 = vmul.f32 %v923, %v924
    %v926 = vsub.f32 1.0, %v925
    %v927 = vmul.f32 %v924, %v926
    %v928 = vadd.f32 %v924, %v927
    %vm929 = vweird.f32 %v923
    %vm930 = vweird.f32 %v924
    %vm931 = vmor %vm929, %vm930
    %v932 = vsel %vm931, %v924, %v928
    %v933 = vand.u32 2147483647, %v923
    %vm934 = vcmp.eq.f32.partialorder %v933, 8.507059e+37
    %v935 = vand.u32 %v923, 2147483648
    %v936 = vor.u32 1.1754944e-38, %v935
    %v937 = vsel %vm934, %v936, %v932
    %v938 = vmul.f32 1.0, %v937
    %v939 = vadd.f32 %v857, %v446
    %941 = vrot.lane.b32.xlu0 %v939, 64
    %v942 = vpop.permute.xlu0 %941
    %v944 = vmul.f32 %v918, %v942
    %946 = vrot.lane.b32.xlu0 %v944, 64
    %v947 = vpop.permute.xlu0 %946
    %v949 = vadd.f32 %v288, %v947
    %v950 = vtanh.pop %v949
    %v951 = vsub.f32 1.0, %v938
    %953 = vrot.lane.b32.xlu0 %v950, 96
    %v954 = vpop.permute.xlu0 %953
    %v956 = vmul.f32 %v951, %v954
    %v958 = vmul.f32 %v938, %v809
    %v959 = vadd.f32 %v956, %v958
    %961 = vrot.lane.b32.xlu0 %v898, 96
    %v962 = vpop.permute.xlu0 %961
    %s964 = scalar_lea.vmem [#allocation5], 24
    %965 = vst.msk [vmem:[%s964] sm:$0xff] %vm313, %v962
    %967 = vrot.lane.b32.xlu0 %v959, 32
    %v968 = vpop.permute.xlu0 %967
    %s970 = scalar_lea.vmem [#allocation5], 32
    %971 = vst.msk [vmem:[%s970] sm:$0xff] %vm478, %v968
    %972 = vrot.lane.b32.xlu0 %v968, 96
    %v973 = vpop.permute.xlu0 %972
    %v974 = vsel %vm313, %v962, 0
    %v976 = vsel %vm313, %v973, 0
    %978 = vmatpush.msra.mxu0 0.0
    %979 = vmatpush.msra.mxu0 0.0
    %980 = vmatpush.msra.mxu0 0.0
    %981 = vmatpush.msra.mxu0 0.0
    %982 = vmatpush.msra.mxu0 0.0
    %983 = vmatpush.msra.mxu0 0.0
    %984 = vmatpush.msra.mxu0 0.0
    %985 = vmatpush.msra.mxu0 0.0
    %986 = vmatpush.msra.mxu0 0.0
    %987 = vmatpush.msra.mxu0 0.0
    %988 = vmatpush.msra.mxu0 0.0
    %989 = vmatpush.msra.mxu0 0.0
    %990 = vmatpush.msra.mxu0 %v305
    %991 = vmatpush.msra.mxu0 %v303
    %992 = vmatpush.msra.mxu0 %v301
    %993 = vmatpush.msra.mxu0 %v299
    %994 = vmatmul.f32.gmra.mxu0 %v974
    %v995 = vpop.f32.mrf.mxu0
    %v996 = vadd.f32 0.0, %v995
    %997 = vmatmul.f32.gmra.mxu0 %v976
    %v998 = vpop.f32.mrf.mxu0
    %v999 = vadd.f32 0.0, %v998
    %1000 = vdwg.mxu0
    %1001 = vmatpush.msra.mxu0 0.0
    %1002 = vmatpush.msra.mxu0 0.0
    %1003 = vmatpush.msra.mxu0 0.0
    %1004 = vmatpush.msra.mxu0 0.0
    %1005 = vmatpush.msra.mxu0 0.0
    %1006 = vmatpush.msra.mxu0 0.0
    %1007 = vmatpush.msra.mxu0 0.0
    %1008 = vmatpush.msra.mxu0 0.0
    %1009 = vmatpush.msra.mxu0 0.0
    %1010 = vmatpush.msra.mxu0 0.0
    %1011 = vmatpush.msra.mxu0 0.0
    %1012 = vmatpush.msra.mxu0 0.0
    %1013 = vmatpush.msra.mxu0 %v306
    %1014 = vmatpush.msra.mxu0 %v304
    %1015 = vmatpush.msra.mxu0 %v302
    %1016 = vmatpush.msra.mxu0 %v300
    %1017 = vmatmul.f32.gmra.mxu0 %v974
    %v1018 = vpop.f32.mrf.mxu0
    %1019 = vmatmul.f32.gmra.mxu0 %v976
    %v1020 = vpop.f32.mrf.mxu0
    %v1021 = vadd.f32 0.0, %v1020
    %1022 = vdwg.mxu0
    %v1023 = vadd.f32 %v247, %v996
    %v1024 = vxor.u32 %v1023, 2147483648
    %v1025 = vmul.f32 %v1024, 1.442695
    %v1026 = vpow.pop %v1025
    %v1027 = vadd.f32 %v1026, 1.0
    %v1028 = vrcp.pop %v1027
    %v1029 = vmul.f32 %v1027, %v1028
    %v1030 = vsub.f32 1.0, %v1029
    %v1031 = vmul.f32 %v1028, %v1030
    %v1032 = vadd.f32 %v1028, %v1031
    %vm1033 = vweird.f32 %v1027
    %vm1034 = vweird.f32 %v1028
    %vm1035 = vmor %vm1033, %vm1034
    %v1036 = vsel %vm1035, %v1028, %v1032
    %v1037 = vand.u32 2147483647, %v1027
    %vm1038 = vcmp.eq.f32.partialorder %v1037, 8.507059e+37
    %v1039 = vand.u32 %v1027, 2147483648
    %v1040 = vor.u32 1.1754944e-38, %v1039
    %v1041 = vsel %vm1038, %v1040, %v1036
    %v1042 = vmul.f32 1.0, %v1041
    %v1043 = vadd.f32 %v996, %v383
    %1045 = vrot.lane.b32.xlu0 %v1043, 64
    %v1046 = vpop.permute.xlu0 %1045
    %v1048 = vmul.f32 %v1042, %v1046
    %1050 = vrot.lane.b32.xlu0 %v1048, 64
    %v1051 = vpop.permute.xlu0 %1050
    %v1053 = vadd.f32 %v247, %v1051
    %v1054 = vtanh.pop %v1053
    %v1055 = vsub.f32 1.0, %v1042
    %1057 = vrot.lane.b32.xlu0 %v1054, 96
    %v1058 = vpop.permute.xlu0 %1057
    %v1060 = vmul.f32 %v1055, %v1058
    %v1061 = vmul.f32 %v1042, %v898
    %v1062 = vadd.f32 %v1060, %v1061
    %v1063 = vadd.f32 %v244, %v999
    %v1064 = vxor.u32 %v1063, 2147483648
    %v1065 = vmul.f32 %v1064, 1.442695
    %v1066 = vpow.pop %v1065
    %v1067 = vadd.f32 %v1066, 1.0
    %v1068 = vrcp.pop %v1067
    %v1069 = vmul.f32 %v1067, %v1068
    %v1070 = vsub.f32 1.0, %v1069
    %v1071 = vmul.f32 %v1068, %v1070
    %v1072 = vadd.f32 %v1068, %v1071
    %vm1073 = vweird.f32 %v1067
    %vm1074 = vweird.f32 %v1068
    %vm1075 = vmor %vm1073, %vm1074
    %v1076 = vsel %vm1075, %v1068, %v1072
    %v1077 = vand.u32 2147483647, %v1067
    %vm1078 = vcmp.eq.f32.partialorder %v1077, 8.507059e+37
    %v1079 = vand.u32 %v1067, 2147483648
    %v1080 = vor.u32 1.1754944e-38, %v1079
    %v1081 = vsel %vm1078, %v1080, %v1076
    %v1082 = vmul.f32 1.0, %v1081
    %v1083 = vadd.f32 %v285, %v1021
    %v1084 = vxor.u32 %v1083, 2147483648
    %v1085 = vmul.f32 %v1084, 1.442695
    %v1086 = vpow.pop %v1085
    %v1087 = vadd.f32 %v1086, 1.0
    %v1088 = vrcp.pop %v1087
    %v1089 = vmul.f32 %v1087, %v1088
    %v1090 = vsub.f32 1.0, %v1089
    %v1091 = vmul.f32 %v1088, %v1090
    %v1092 = vadd.f32 %v1088, %v1091
    %vm1093 = vweird.f32 %v1087
    %vm1094 = vweird.f32 %v1088
    %vm1095 = vmor %vm1093, %vm1094
    %v1096 = vsel %vm1095, %v1088, %v1092
    %v1097 = vand.u32 2147483647, %v1087
    %vm1098 = vcmp.eq.f32.partialorder %v1097, 8.507059e+37
    %v1099 = vand.u32 %v1087, 2147483648
    %v1100 = vor.u32 1.1754944e-38, %v1099
    %v1101 = vsel %vm1098, %v1100, %v1096
    %v1102 = vmul.f32 1.0, %v1101
    %v1103 = vadd.f32 %v1021, %v446
    %1105 = vrot.lane.b32.xlu0 %v1103, 64
    %v1106 = vpop.permute.xlu0 %1105
    %v1108 = vmul.f32 %v1082, %v1106
    %1110 = vrot.lane.b32.xlu0 %v1108, 64
    %v1111 = vpop.permute.xlu0 %1110
    %v1113 = vadd.f32 %v285, %v1111
    %v1114 = vtanh.pop %v1113
    %v1115 = vsub.f32 1.0, %v1102
    %1117 = vrot.lane.b32.xlu0 %v1114, 96
    %v1118 = vpop.permute.xlu0 %1117
    %v1120 = vmul.f32 %v1115, %v1118
    %v1122 = vmul.f32 %v1102, %v973
    %v1123 = vadd.f32 %v1120, %v1122
    %1125 = vrot.lane.b32.xlu0 %v1062, 96
    %v1126 = vpop.permute.xlu0 %1125
    %1128 = vst.msk [vmem:[%s970] sm:$0xff] %vm313, %v1126
    %1130 = vrot.lane.b32.xlu0 %v1123, 32
    %v1131 = vpop.permute.xlu0 %1130
    %1133 = vst.msk [vmem:[%s964] sm:$0xff] %vm478, %v1131
    %1134 = vrot.lane.b32.xlu0 %v1131, 96
    %v1135 = vpop.permute.xlu0 %1134
    %v1136 = vsel %vm313, %v1126, 0
    %v1138 = vsel %vm313, %v1135, 0
    %1140 = vmatpush.msra.mxu0 0.0
    %1141 = vmatpush.msra.mxu0 0.0
    %1142 = vmatpush.msra.mxu0 0.0
    %1143 = vmatpush.msra.mxu0 0.0
    %1144 = vmatpush.msra.mxu0 0.0
    %1145 = vmatpush.msra.mxu0 0.0
    %1146 = vmatpush.msra.mxu0 0.0
    %1147 = vmatpush.msra.mxu0 0.0
    %1148 = vmatpush.msra.mxu0 0.0
    %1149 = vmatpush.msra.mxu0 0.0
    %1150 = vmatpush.msra.mxu0 0.0
    %1151 = vmatpush.msra.mxu0 0.0
    %1152 = vmatpush.msra.mxu0 %v305
    %1153 = vmatpush.msra.mxu0 %v303
    %1154 = vmatpush.msra.mxu0 %v301
    %1155 = vmatpush.msra.mxu0 %v299
    %1156 = vmatmul.f32.gmra.mxu0 %v1136
    %v1157 = vpop.f32.mrf.mxu0
    %v1158 = vadd.f32 0.0, %v1157
    %1159 = vmatmul.f32.gmra.mxu0 %v1138
    %v1160 = vpop.f32.mrf.mxu0
    %v1161 = vadd.f32 0.0, %v1160
    %1162 = vdwg.mxu0
    %1163 = vmatpush.msra.mxu0 0.0
    %1164 = vmatpush.msra.mxu0 0.0
    %1165 = vmatpush.msra.mxu0 0.0
    %1166 = vmatpush.msra.mxu0 0.0
    %1167 = vmatpush.msra.mxu0 0.0
    %1168 = vmatpush.msra.mxu0 0.0
    %1169 = vmatpush.msra.mxu0 0.0
    %1170 = vmatpush.msra.mxu0 0.0
    %1171 = vmatpush.msra.mxu0 0.0
    %1172 = vmatpush.msra.mxu0 0.0
    %1173 = vmatpush.msra.mxu0 0.0
    %1174 = vmatpush.msra.mxu0 0.0
    %1175 = vmatpush.msra.mxu0 %v306
    %1176 = vmatpush.msra.mxu0 %v304
    %1177 = vmatpush.msra.mxu0 %v302
    %1178 = vmatpush.msra.mxu0 %v300
    %1179 = vmatmul.f32.gmra.mxu0 %v1136
    %v1180 = vpop.f32.mrf.mxu0
    %1181 = vmatmul.f32.gmra.mxu0 %v1138
    %v1182 = vpop.f32.mrf.mxu0
    %v1183 = vadd.f32 0.0, %v1182
    %1184 = vdwg.mxu0
    %v1185 = vadd.f32 %v250, %v1158
    %v1186 = vxor.u32 %v1185, 2147483648
    %v1187 = vmul.f32 %v1186, 1.442695
    %v1188 = vpow.pop %v1187
    %v1189 = vadd.f32 %v1188, 1.0
    %v1190 = vrcp.pop %v1189
    %v1191 = vmul.f32 %v1189, %v1190
    %v1192 = vsub.f32 1.0, %v1191
    %v1193 = vmul.f32 %v1190, %v1192
    %v1194 = vadd.f32 %v1190, %v1193
    %vm1195 = vweird.f32 %v1189
    %vm1196 = vweird.f32 %v1190
    %vm1197 = vmor %vm1195, %vm1196
    %v1198 = vsel %vm1197, %v1190, %v1194
    %v1199 = vand.u32 2147483647, %v1189
    %vm1200 = vcmp.eq.f32.partialorder %v1199, 8.507059e+37
    %v1201 = vand.u32 %v1189, 2147483648
    %v1202 = vor.u32 1.1754944e-38, %v1201
    %v1203 = vsel %vm1200, %v1202, %v1198
    %v1204 = vmul.f32 1.0, %v1203
    %v1205 = vadd.f32 %v1158, %v383
    %1207 = vrot.lane.b32.xlu0 %v1205, 64
    %v1208 = vpop.permute.xlu0 %1207
    %v1210 = vmul.f32 %v1204, %v1208
    %1212 = vrot.lane.b32.xlu0 %v1210, 64
    %v1213 = vpop.permute.xlu0 %1212
    %v1215 = vadd.f32 %v250, %v1213
    %v1216 = vtanh.pop %v1215
    %v1217 = vsub.f32 1.0, %v1204
    %1219 = vrot.lane.b32.xlu0 %v1216, 96
    %v1220 = vpop.permute.xlu0 %1219
    %v1222 = vmul.f32 %v1217, %v1220
    %v1223 = vmul.f32 %v1204, %v1062
    %v1224 = vadd.f32 %v1222, %v1223
    %v1225 = vadd.f32 %v241, %v1161
    %v1226 = vxor.u32 %v1225, 2147483648
    %v1227 = vmul.f32 %v1226, 1.442695
    %v1228 = vpow.pop %v1227
    %v1229 = vadd.f32 %v1228, 1.0
    %v1230 = vrcp.pop %v1229
    %v1231 = vmul.f32 %v1229, %v1230
    %v1232 = vsub.f32 1.0, %v1231
    %v1233 = vmul.f32 %v1230, %v1232
    %v1234 = vadd.f32 %v1230, %v1233
    %vm1235 = vweird.f32 %v1229
    %vm1236 = vweird.f32 %v1230
    %vm1237 = vmor %vm1235, %vm1236
    %v1238 = vsel %vm1237, %v1230, %v1234
    %v1239 = vand.u32 2147483647, %v1229
    %vm1240 = vcmp.eq.f32.partialorder %v1239, 8.507059e+37
    %v1241 = vand.u32 %v1229, 2147483648
    %v1242 = vor.u32 1.1754944e-38, %v1241
    %v1243 = vsel %vm1240, %v1242, %v1238
    %v1244 = vmul.f32 1.0, %v1243
    %v1245 = vadd.f32 %v282, %v1183
    %v1246 = vxor.u32 %v1245, 2147483648
    %v1247 = vmul.f32 %v1246, 1.442695
    %v1248 = vpow.pop %v1247
    %v1249 = vadd.f32 %v1248, 1.0
    %v1250 = vrcp.pop %v1249
    %v1251 = vmul.f32 %v1249, %v1250
    %v1252 = vsub.f32 1.0, %v1251
    %v1253 = vmul.f32 %v1250, %v1252
    %v1254 = vadd.f32 %v1250, %v1253
    %vm1255 = vweird.f32 %v1249
    %vm1256 = vweird.f32 %v1250
    %vm1257 = vmor %vm1255, %vm1256
    %v1258 = vsel %vm1257, %v1250, %v1254
    %v1259 = vand.u32 2147483647, %v1249
    %vm1260 = vcmp.eq.f32.partialorder %v1259, 8.507059e+37
    %v1261 = vand.u32 %v1249, 2147483648
    %v1262 = vor.u32 1.1754944e-38, %v1261
    %v1263 = vsel %vm1260, %v1262, %v1258
    %v1264 = vmul.f32 1.0, %v1263
    %v1265 = vadd.f32 %v1183, %v446
    %1267 = vrot.lane.b32.xlu0 %v1265, 64
    %v1268 = vpop.permute.xlu0 %1267
    %v1270 = vmul.f32 %v1244, %v1268
    %1272 = vrot.lane.b32.xlu0 %v1270, 64
    %v1273 = vpop.permute.xlu0 %1272
    %v1275 = vadd.f32 %v282, %v1273
    %v1276 = vtanh.pop %v1275
    %v1277 = vsub.f32 1.0, %v1264
    %1279 = vrot.lane.b32.xlu0 %v1276, 96
    %v1280 = vpop.permute.xlu0 %1279
    %v1282 = vmul.f32 %v1277, %v1280
    %v1284 = vmul.f32 %v1264, %v1135
    %v1285 = vadd.f32 %v1282, %v1284
    %1287 = vrot.lane.b32.xlu0 %v1224, 96
    %v1288 = vpop.permute.xlu0 %1287
    %1290 = vst.msk [vmem:[%s806] sm:$0xff] %vm313, %v1288
    %1292 = vrot.lane.b32.xlu0 %v1285, 32
    %v1293 = vpop.permute.xlu0 %1292
    %1295 = vst.msk [vmem:[%s800] sm:$0xff] %vm478, %v1293
    %1296 = vrot.lane.b32.xlu0 %v1293, 96
    %v1297 = vpop.permute.xlu0 %1296
    %v1298 = vsel %vm313, %v1288, 0
    %v1300 = vsel %vm313, %v1297, 0
    %1302 = vmatpush.msra.mxu0 0.0
    %1303 = vmatpush.msra.mxu0 0.0
    %1304 = vmatpush.msra.mxu0 0.0
    %1305 = vmatpush.msra.mxu0 0.0
    %1306 = vmatpush.msra.mxu0 0.0
    %1307 = vmatpush.msra.mxu0 0.0
    %1308 = vmatpush.msra.mxu0 0.0
    %1309 = vmatpush.msra.mxu0 0.0
    %1310 = vmatpush.msra.mxu0 0.0
    %1311 = vmatpush.msra.mxu0 0.0
    %1312 = vmatpush.msra.mxu0 0.0
    %1313 = vmatpush.msra.mxu0 0.0
    %1314 = vmatpush.msra.mxu0 %v305
    %1315 = vmatpush.msra.mxu0 %v303
    %1316 = vmatpush.msra.mxu0 %v301
    %1317 = vmatpush.msra.mxu0 %v299
    %1318 = vmatmul.f32.gmra.mxu0 %v1298
    %v1319 = vpop.f32.mrf.mxu0
    %v1320 = vadd.f32 0.0, %v1319
    %1321 = vmatmul.f32.gmra.mxu0 %v1300
    %v1322 = vpop.f32.mrf.mxu0
    %v1323 = vadd.f32 0.0, %v1322
    %1324 = vdwg.mxu0
    %1325 = vmatpush.msra.mxu0 0.0
    %1326 = vmatpush.msra.mxu0 0.0
    %1327 = vmatpush.msra.mxu0 0.0
    %1328 = vmatpush.msra.mxu0 0.0
    %1329 = vmatpush.msra.mxu0 0.0
    %1330 = vmatpush.msra.mxu0 0.0
    %1331 = vmatpush.msra.mxu0 0.0
    %1332 = vmatpush.msra.mxu0 0.0
    %1333 = vmatpush.msra.mxu0 0.0
    %1334 = vmatpush.msra.mxu0 0.0
    %1335 = vmatpush.msra.mxu0 0.0
    %1336 = vmatpush.msra.mxu0 0.0
    %1337 = vmatpush.msra.mxu0 %v306
    %1338 = vmatpush.msra.mxu0 %v304
    %1339 = vmatpush.msra.mxu0 %v302
    %1340 = vmatpush.msra.mxu0 %v300
    %1341 = vmatmul.f32.gmra.mxu0 %v1298
    %v1342 = vpop.f32.mrf.mxu0
    %1343 = vmatmul.f32.gmra.mxu0 %v1300
    %v1344 = vpop.f32.mrf.mxu0
    %v1345 = vadd.f32 0.0, %v1344
    %1346 = vdwg.mxu0
    %v1347 = vadd.f32 %v253, %v1320
    %v1348 = vxor.u32 %v1347, 2147483648
    %v1349 = vmul.f32 %v1348, 1.442695
    %v1350 = vpow.pop %v1349
    %v1351 = vadd.f32 %v1350, 1.0
    %v1352 = vrcp.pop %v1351
    %v1353 = vmul.f32 %v1351, %v1352
    %v1354 = vsub.f32 1.0, %v1353
    %v1355 = vmul.f32 %v1352, %v1354
    %v1356 = vadd.f32 %v1352, %v1355
    %vm1357 = vweird.f32 %v1351
    %vm1358 = vweird.f32 %v1352
    %vm1359 = vmor %vm1357, %vm1358
    %v1360 = vsel %vm1359, %v1352, %v1356
    %v1361 = vand.u32 2147483647, %v1351
    %vm1362 = vcmp.eq.f32.partialorder %v1361, 8.507059e+37
    %v1363 = vand.u32 %v1351, 2147483648
    %v1364 = vor.u32 1.1754944e-38, %v1363
    %v1365 = vsel %vm1362, %v1364, %v1360
    %v1366 = vmul.f32 1.0, %v1365
    %v1367 = vadd.f32 %v1320, %v383
    %1369 = vrot.lane.b32.xlu0 %v1367, 64
    %v1370 = vpop.permute.xlu0 %1369
    %v1372 = vmul.f32 %v1366, %v1370
    %1374 = vrot.lane.b32.xlu0 %v1372, 64
    %v1375 = vpop.permute.xlu0 %1374
    %v1377 = vadd.f32 %v253, %v1375
    %v1378 = vtanh.pop %v1377
    %v1379 = vsub.f32 1.0, %v1366
    %1381 = vrot.lane.b32.xlu0 %v1378, 96
    %v1382 = vpop.permute.xlu0 %1381
    %v1384 = vmul.f32 %v1379, %v1382
    %v1385 = vmul.f32 %v1366, %v1224
    %v1386 = vadd.f32 %v1384, %v1385
    %v1387 = vadd.f32 %v238, %v1323
    %v1388 = vxor.u32 %v1387, 2147483648
    %v1389 = vmul.f32 %v1388, 1.442695
    %v1390 = vpow.pop %v1389
    %v1391 = vadd.f32 %v1390, 1.0
    %v1392 = vrcp.pop %v1391
    %v1393 = vmul.f32 %v1391, %v1392
    %v1394 = vsub.f32 1.0, %v1393
    %v1395 = vmul.f32 %v1392, %v1394
    %v1396 = vadd.f32 %v1392, %v1395
    %vm1397 = vweird.f32 %v1391
    %vm1398 = vweird.f32 %v1392
    %vm1399 = vmor %vm1397, %vm1398
    %v1400 = vsel %vm1399, %v1392, %v1396
    %v1401 = vand.u32 2147483647, %v1391
    %vm1402 = vcmp.eq.f32.partialorder %v1401, 8.507059e+37
    %v1403 = vand.u32 %v1391, 2147483648
    %v1404 = vor.u32 1.1754944e-38, %v1403
    %v1405 = vsel %vm1402, %v1404, %v1400
    %v1406 = vmul.f32 1.0, %v1405
    %v1407 = vadd.f32 %v279, %v1345
    %v1408 = vxor.u32 %v1407, 2147483648
    %v1409 = vmul.f32 %v1408, 1.442695
    %v1410 = vpow.pop %v1409
    %v1411 = vadd.f32 %v1410, 1.0
    %v1412 = vrcp.pop %v1411
    %v1413 = vmul.f32 %v1411, %v1412
    %v1414 = vsub.f32 1.0, %v1413
    %v1415 = vmul.f32 %v1412, %v1414
    %v1416 = vadd.f32 %v1412, %v1415
    %vm1417 = vweird.f32 %v1411
    %vm1418 = vweird.f32 %v1412
    %vm1419 = vmor %vm1417, %vm1418
    %v1420 = vsel %vm1419, %v1412, %v1416
    %v1421 = vand.u32 2147483647, %v1411
    %vm1422 = vcmp.eq.f32.partialorder %v1421, 8.507059e+37
    %v1423 = vand.u32 %v1411, 2147483648
    %v1424 = vor.u32 1.1754944e-38, %v1423
    %v1425 = vsel %vm1422, %v1424, %v1420
    %v1426 = vmul.f32 1.0, %v1425
    %v1427 = vadd.f32 %v1345, %v446
    %1429 = vrot.lane.b32.xlu0 %v1427, 64
    %v1430 = vpop.permute.xlu0 %1429
    %v1432 = vmul.f32 %v1406, %v1430
    %1434 = vrot.lane.b32.xlu0 %v1432, 64
    %v1435 = vpop.permute.xlu0 %1434
    %v1437 = vadd.f32 %v279, %v1435
    %v1438 = vtanh.pop %v1437
    %v1439 = vsub.f32 1.0, %v1426
    %1441 = vrot.lane.b32.xlu0 %v1438, 96
    %v1442 = vpop.permute.xlu0 %1441
    %v1444 = vmul.f32 %v1439, %v1442
    %v1446 = vmul.f32 %v1426, %v1297
    %v1447 = vadd.f32 %v1444, %v1446
    %1449 = vrot.lane.b32.xlu0 %v1386, 96
    %v1450 = vpop.permute.xlu0 %1449
    %1452 = vst.msk [vmem:[%s642] sm:$0xff] %vm313, %v1450
    %1454 = vrot.lane.b32.xlu0 %v1447, 32
    %v1455 = vpop.permute.xlu0 %1454
    %1457 = vst.msk [vmem:[%s636] sm:$0xff] %vm478, %v1455
    %1458 = vrot.lane.b32.xlu0 %v1455, 96
    %v1459 = vpop.permute.xlu0 %1458
    %v1460 = vsel %vm313, %v1450, 0
    %v1462 = vsel %vm313, %v1459, 0
    %1464 = vmatpush.msra.mxu0 0.0
    %1465 = vmatpush.msra.mxu0 0.0
    %1466 = vmatpush.msra.mxu0 0.0
    %1467 = vmatpush.msra.mxu0 0.0
    %1468 = vmatpush.msra.mxu0 0.0
    %1469 = vmatpush.msra.mxu0 0.0
    %1470 = vmatpush.msra.mxu0 0.0
    %1471 = vmatpush.msra.mxu0 0.0
    %1472 = vmatpush.msra.mxu0 0.0
    %1473 = vmatpush.msra.mxu0 0.0
    %1474 = vmatpush.msra.mxu0 0.0
    %1475 = vmatpush.msra.mxu0 0.0
    %1476 = vmatpush.msra.mxu0 %v305
    %1477 = vmatpush.msra.mxu0 %v303
    %1478 = vmatpush.msra.mxu0 %v301
    %1479 = vmatpush.msra.mxu0 %v299
    %1480 = vmatmul.f32.gmra.mxu0 %v1460
    %v1481 = vpop.f32.mrf.mxu0
    %v1482 = vadd.f32 0.0, %v1481
    %1483 = vmatmul.f32.gmra.mxu0 %v1462
    %v1484 = vpop.f32.mrf.mxu0
    %v1485 = vadd.f32 0.0, %v1484
    %1486 = vdwg.mxu0
    %1487 = vmatpush.msra.mxu0 0.0
    %1488 = vmatpush.msra.mxu0 0.0
    %1489 = vmatpush.msra.mxu0 0.0
    %1490 = vmatpush.msra.mxu0 0.0
    %1491 = vmatpush.msra.mxu0 0.0
    %1492 = vmatpush.msra.mxu0 0.0
    %1493 = vmatpush.msra.mxu0 0.0
    %1494 = vmatpush.msra.mxu0 0.0
    %1495 = vmatpush.msra.mxu0 0.0
    %1496 = vmatpush.msra.mxu0 0.0
    %1497 = vmatpush.msra.mxu0 0.0
    %1498 = vmatpush.msra.mxu0 0.0
    %1499 = vmatpush.msra.mxu0 %v306
    %1500 = vmatpush.msra.mxu0 %v304
    %1501 = vmatpush.msra.mxu0 %v302
    %1502 = vmatpush.msra.mxu0 %v300
    %1503 = vmatmul.f32.gmra.mxu0 %v1460
    %v1504 = vpop.f32.mrf.mxu0
    %1505 = vmatmul.f32.gmra.mxu0 %v1462
    %v1506 = vpop.f32.mrf.mxu0
    %v1507 = vadd.f32 0.0, %v1506
    %1508 = vdwg.mxu0
    %v1509 = vadd.f32 %v256, %v1482
    %v1510 = vxor.u32 %v1509, 2147483648
    %v1511 = vmul.f32 %v1510, 1.442695
    %v1512 = vpow.pop %v1511
    %v1513 = vadd.f32 %v1512, 1.0
    %v1514 = vrcp.pop %v1513
    %v1515 = vmul.f32 %v1513, %v1514
    %v1516 = vsub.f32 1.0, %v1515
    %v1517 = vmul.f32 %v1514, %v1516
    %v1518 = vadd.f32 %v1514, %v1517
    %vm1519 = vweird.f32 %v1513
    %vm1520 = vweird.f32 %v1514
    %vm1521 = vmor %vm1519, %vm1520
    %v1522 = vsel %vm1521, %v1514, %v1518
    %v1523 = vand.u32 2147483647, %v1513
    %vm1524 = vcmp.eq.f32.partialorder %v1523, 8.507059e+37
    %v1525 = vand.u32 %v1513, 2147483648
    %v1526 = vor.u32 1.1754944e-38, %v1525
    %v1527 = vsel %vm1524, %v1526, %v1522
    %v1528 = vmul.f32 1.0, %v1527
    %v1529 = vadd.f32 %v1482, %v383
    %1531 = vrot.lane.b32.xlu0 %v1529, 64
    %v1532 = vpop.permute.xlu0 %1531
    %v1534 = vmul.f32 %v1528, %v1532
    %1536 = vrot.lane.b32.xlu0 %v1534, 64
    %v1537 = vpop.permute.xlu0 %1536
    %v1539 = vadd.f32 %v256, %v1537
    %v1540 = vtanh.pop %v1539
    %v1541 = vsub.f32 1.0, %v1528
    %1543 = vrot.lane.b32.xlu0 %v1540, 96
    %v1544 = vpop.permute.xlu0 %1543
    %v1546 = vmul.f32 %v1541, %v1544
    %v1547 = vmul.f32 %v1528, %v1386
    %v1548 = vadd.f32 %v1546, %v1547
    %v1549 = vadd.f32 %v235, %v1485
    %v1550 = vxor.u32 %v1549, 2147483648
    %v1551 = vmul.f32 %v1550, 1.442695
    %v1552 = vpow.pop %v1551
    %v1553 = vadd.f32 %v1552, 1.0
    %v1554 = vrcp.pop %v1553
    %v1555 = vmul.f32 %v1553, %v1554
    %v1556 = vsub.f32 1.0, %v1555
    %v1557 = vmul.f32 %v1554, %v1556
    %v1558 = vadd.f32 %v1554, %v1557
    %vm1559 = vweird.f32 %v1553
    %vm1560 = vweird.f32 %v1554
    %vm1561 = vmor %vm1559, %vm1560
    %v1562 = vsel %vm1561, %v1554, %v1558
    %v1563 = vand.u32 2147483647, %v1553
    %vm1564 = vcmp.eq.f32.partialorder %v1563, 8.507059e+37
    %v1565 = vand.u32 %v1553, 2147483648
    %v1566 = vor.u32 1.1754944e-38, %v1565
    %v1567 = vsel %vm1564, %v1566, %v1562
    %v1568 = vmul.f32 1.0, %v1567
    %v1569 = vadd.f32 %v276, %v1507
    %v1570 = vxor.u32 %v1569, 2147483648
    %v1571 = vmul.f32 %v1570, 1.442695
    %v1572 = vpow.pop %v1571
    %v1573 = vadd.f32 %v1572, 1.0
    %v1574 = vrcp.pop %v1573
    %v1575 = vmul.f32 %v1573, %v1574
    %v1576 = vsub.f32 1.0, %v1575
    %v1577 = vmul.f32 %v1574, %v1576
    %v1578 = vadd.f32 %v1574, %v1577
    %vm1579 = vweird.f32 %v1573
    %vm1580 = vweird.f32 %v1574
    %vm1581 = vmor %vm1579, %vm1580
    %v1582 = vsel %vm1581, %v1574, %v1578
    %v1583 = vand.u32 2147483647, %v1573
    %vm1584 = vcmp.eq.f32.partialorder %v1583, 8.507059e+37
    %v1585 = vand.u32 %v1573, 2147483648
    %v1586 = vor.u32 1.1754944e-38, %v1585
    %v1587 = vsel %vm1584, %v1586, %v1582
    %v1588 = vmul.f32 1.0, %v1587
    %v1589 = vadd.f32 %v1507, %v446
    %1591 = vrot.lane.b32.xlu0 %v1589, 64
    %v1592 = vpop.permute.xlu0 %1591
    %v1594 = vmul.f32 %v1568, %v1592
    %1596 = vrot.lane.b32.xlu0 %v1594, 64
    %v1597 = vpop.permute.xlu0 %1596
    %v1599 = vadd.f32 %v276, %v1597
    %v1600 = vtanh.pop %v1599
    %v1601 = vsub.f32 1.0, %v1588
    %1603 = vrot.lane.b32.xlu0 %v1600, 96
    %v1604 = vpop.permute.xlu0 %1603
    %v1606 = vmul.f32 %v1601, %v1604
    %v1608 = vmul.f32 %v1588, %v1459
    %v1609 = vadd.f32 %v1606, %v1608
    %1611 = vrot.lane.b32.xlu0 %v1548, 96
    %v1612 = vpop.permute.xlu0 %1611
    %1614 = vst.msk [vmem:[%s477] sm:$0xff] %vm313, %v1612
    %1616 = vrot.lane.b32.xlu0 %v1609, 32
    %v1617 = vpop.permute.xlu0 %1616
    %1619 = vst.msk [vmem:[#allocation5] sm:$0xff] %vm478, %v1617
    %v1620 = vld [vmem:[%s7] sm:$0xff]
    %v1621 = vld [vmem:[%s7 + $0x8] sm:$0xff]
    %v1622 = vld [vmem:[%s7 + $0x10] sm:$0xff]
    %v1623 = vld [vmem:[%s7 + $0x18] sm:$0xff]
    %v1624 = vld [vmem:[#allocation2] sm:$0xff]
    %v1625 = vld [vmem:[#allocation2 + $0x8] sm:$0xff]
    %v1626 = vld [vmem:[#allocation2 + $0x10] sm:$0xff]
    %v1627 = vld [vmem:[#allocation2 + $0x18] sm:$0xff]
    %1628 = vrot.lane.b32.xlu0 %v1617, 96
    %v1629 = vpop.permute.xlu0 %1628
    %v1630 = vsel %vm313, %v1629, 0
    %1632 = vmatpush.msra.mxu0 0.0
    %1633 = vmatpush.msra.mxu0 0.0
    %1634 = vmatpush.msra.mxu0 0.0
    %1635 = vmatpush.msra.mxu0 0.0
    %1636 = vmatpush.msra.mxu0 0.0
    %1637 = vmatpush.msra.mxu0 0.0
    %1638 = vmatpush.msra.mxu0 0.0
    %1639 = vmatpush.msra.mxu0 0.0
    %1640 = vmatpush.msra.mxu0 0.0
    %1641 = vmatpush.msra.mxu0 0.0
    %1642 = vmatpush.msra.mxu0 0.0
    %1643 = vmatpush.msra.mxu0 0.0
    %1644 = vmatpush.msra.mxu0 %v1627
    %1645 = vmatpush.msra.mxu0 %v1626
    %1646 = vmatpush.msra.mxu0 %v1625
    %1647 = vmatpush.msra.mxu0 %v1624
    %1648 = vmatmul.f32.gmra.mxu0 %v1630
    %v1649 = vpop.f32.mrf.mxu0
    %v1650 = vadd.f32 0.0, %v1649
    %1651 = vdwg.mxu0
    %v1652 = vsel %vm313, %v1612, 0
    %1654 = vmatpush.msra.mxu0 0.0
    %1655 = vmatpush.msra.mxu0 0.0
    %1656 = vmatpush.msra.mxu0 0.0
    %1657 = vmatpush.msra.mxu0 0.0
    %1658 = vmatpush.msra.mxu0 0.0
    %1659 = vmatpush.msra.mxu0 0.0
    %1660 = vmatpush.msra.mxu0 0.0
    %1661 = vmatpush.msra.mxu0 0.0
    %1662 = vmatpush.msra.mxu0 0.0
    %1663 = vmatpush.msra.mxu0 0.0
    %1664 = vmatpush.msra.mxu0 0.0
    %1665 = vmatpush.msra.mxu0 0.0
    %1666 = vmatpush.msra.mxu0 %v1623
    %1667 = vmatpush.msra.mxu0 %v1622
    %1668 = vmatpush.msra.mxu0 %v1621
    %1669 = vmatpush.msra.mxu0 %v1620
    %1670 = vmatmul.f32.gmra.mxu0 %v1652
    %v1671 = vpop.f32.mrf.mxu0
    %v1672 = vadd.f32 %v1650, %v1671
    %1673 = vdwg.mxu0
    %v1674 = vld [vmem:[%s9] sm:$0x1]
    %v1676 = vperm.slane %v1674, 0
    %v1678 = vadd.f32 %v1672, %v1676
    %v1679 = vtanh.pop %v1678
    %1680 = vst.msk [vmem:[#allocation6] sm:$0xff] %vm313, %v1679
    // Predicated region
    $region46: #{encoder_forward.1} parent=1 // pred_check
      _
    $region47: #{encoder_forward.1} parent=1 // pred_check_branch
      %1682 = sbr.rel (0) target = $region49
    $region48: #{encoder_forward.1} parent=1 // pred_region
      %1684 = vsyncadd [#allocation4], 0
      %s1685 = sshll.u32 [#allocation5], 4
      %s1686 = int_to_ptr.vmem [resolvable:$true] %s1685
      %s1687 = sshll.u32 %s10, 4
      %s1688 = int_to_ptr.hbm [resolvable:$true] %s1687
      %1693 = dma.vmem_to_hbm [thread:$0]  %s1686, 1024, %s1688, [#allocation4], 128, 128, 8
    $region49: #{encoder_forward.1} parent=1 // pred_fallthru
      _
    // Predicated region
    $region50: #{encoder_forward.1} parent=1 // pred_check
      _
    $region51: #{encoder_forward.1} parent=1 // pred_check_branch
      %1695 = sbr.rel (0) target = $region53
    $region52: #{encoder_forward.1} parent=1 // pred_region
      %1697 = vsyncadd [#allocation7], 0
      %s1699 = sshll.u32 [#allocation6], 4
      %s1700 = int_to_ptr.vmem [resolvable:$true] %s1699
      %s1701 = sshll.u32 %s11, 4
      %s1702 = int_to_ptr.hbm [resolvable:$true] %s1701
      %1704 = dma.vmem_to_hbm [thread:$0]  %s1700, 128, %s1702, [#allocation7]
    $region53: #{encoder_forward.1} parent=1 // pred_fallthru
      _
    // Predicated region
    $region54: #{encoder_forward.1} parent=1 // pred_check
      _
    $region55: #{encoder_forward.1} parent=1 // pred_check_branch
      %1706 = sbr.rel (0) target = $region57
    $region56: #{encoder_forward.1} parent=1 // pred_region
      %1708 = dma.done [#allocation4], 1024
    $region57: #{encoder_forward.1} parent=1 // pred_fallthru
      _
    // Predicated region
    $region58: #{encoder_forward.1} parent=1 // pred_check
      _
    $region59: #{encoder_forward.1} parent=1 // pred_check_branch
      %1710 = sbr.rel (0) target = $region61
    $region60: #{encoder_forward.1} parent=1 // pred_region
      %1712 = dma.done [#allocation7], 128
    $region61: #{encoder_forward.1} parent=1 // pred_fallthru
      _
    %1713 = vsyncpa [#allocation3], 1
    %1714 = vsyncpa [#allocation4], 1
    %1715 = vsyncpa [#allocation7], 1

</llo_original>
